<compile_context>
chip_gen: v5e
topology: v5e:2x2
jax: 0.10.0
libtpu: 0.0.40
codegen_flags: <defaults>
</compile_context>

<pallas_src>
import jax
import jax.numpy as jnp
import numpy as np
from jax.experimental import pallas as pl
from jax.experimental.pallas import tpu as pltpu

NEG_SLOPE = 0.01  # PyTorch nn.LeakyReLU() default


def _round_up(x, m):
    return ((x + m - 1) // m) * m


def _pick_tile_h(Ho, Wo, Cin, Cout, out_itemsize, n_batch):
    """Largest output-row tile whose double-buffered blocks stay ~<= 12 MiB."""
    wo1 = Wo + 1
    per_row = (2 * (3 * wo1 * 2 * Cin * 2           # bf16 x-block, double-buffered
                    + Wo * Cout * out_itemsize)      # out block, double-buffered
               + Wo * Cout * 4)                      # f32 accumulator
    fixed = 2 * (9 * Cin * Cout * 2 + Cout * 4)      # resident weight + bias
    budget = 12 * 1024 * 1024
    tho = (budget - fixed) // max(per_row, 1)
    tho = int(max(8, min(tho, 256)))
    tho = max(8, (tho // 8) * 8)                     # multiple of 8 -> aligned stores
    if n_batch == 1 and Ho > 8:
        # keep >= 2 row tiles so both v7x TensorCores get work
        tho = min(tho, max(8, _round_up(-(-Ho // 2), 8)))
    tho = min(tho, _round_up(Ho, 8))
    return max(8, (tho // 8) * 8)


def _downsample_kernel(x_ref, w_ref, b_ref, o_ref):
    # x_ref: (3, tho, Wo+1, 2*Cin) bf16 -- padded input rows 2*ho+kh, even/odd
    #        output columns folded into the lane axis.
    # w_ref: (3, 3, Cin, Cout) bf16     -- resident conv weight per tap.
    # b_ref: (1, Cout) f32              -- resident bias.
    # o_ref: (tho*Wo, Cout)             -- conv + bias + LeakyReLU output.
    tho = x_ref.shape[1]
    wo = x_ref.shape[2] - 1
    cin = w_ref.shape[2]
    cout = w_ref.shape[3]

    acc = jnp.zeros((tho * wo, cout), jnp.float32)
    for kh in range(3):
        for kw in range(3):
            woff = kw // 2            # 0, 0, 1  (folded column offset)
            ph = kw % 2               # 0, 1, 0  (even / odd column phase)
            lhs = x_ref[kh, :, woff:woff + wo, ph * cin:(ph + 1) * cin]
            lhs = lhs.reshape(tho * wo, cin)
            acc = acc + jnp.dot(lhs, w_ref[kh, kw],
                                preferred_element_type=jnp.float32)
    acc = acc + b_ref[...]
    o_ref[...] = jnp.maximum(acc, NEG_SLOPE * acc).astype(o_ref.dtype)


def downsampling_forward(x_nchw, weight, bias):
    """x_nchw: (N, C, H, W); weight: (Cout, Cin, 3, 3) [PyTorch OIHW]; bias: (Cout,)."""
    N, C, H, W = x_nchw.shape
    Cout = weight.shape[0]
    Ho = (H - 1) // 2 + 1
    Wo = (W - 1) // 2 + 1
    Wo1 = Wo + 1
    out_dtype = x_nchw.dtype
    itemsize = np.dtype(out_dtype).itemsize

    # ---- glue (plain JAX, ~1.5x input bytes instead of a 9x im2col) ----
    x_nhwc = jnp.transpose(x_nchw, (0, 2, 3, 1))
    pad_r = 2 * Wo + 1 - W                       # conv pad + make width 2*Wo+2
    xp = jnp.pad(x_nhwc, ((0, 0), (1, 1), (1, pad_r), (0, 0)))

    # xrows[kh, n, ho] = padded input row 2*ho + kh; columns folded (wo', parity)
    # into the lane dim 2*C so the kernel only needs static slices per tap.
    xrows = jnp.stack([xp[:, kh:kh + 2 * Ho:2, :, :] for kh in range(3)], axis=0)
    xrows = xrows.reshape(3, N, Ho, Wo1, 2 * C).astype(jnp.bfloat16)

    tho = _pick_tile_h(Ho, Wo, C, Cout, itemsize, N)
    HoP = _round_up(Ho, tho)
    if HoP != Ho:
        xrows = jnp.pad(xrows, ((0, 0), (0, 0), (0, HoP - Ho), (0, 0), (0, 0)))
    n_row_tiles = HoP // tho

    wtaps = jnp.transpose(weight, (2, 3, 1, 0)).astype(jnp.bfloat16)  # (3,3,Cin,Cout)
    brow = bias.reshape(1, Cout).astype(jnp.float32)

    # VMEM budget -> compiler params
    x_blk = 3 * tho * Wo1 * 2 * C * 2
    out_blk = tho * Wo * Cout * itemsize
    w_bytes = 9 * C * Cout * 2
    need = 2 * (x_blk + out_blk + w_bytes + Cout * 4) + tho * Wo * Cout * 4
    vmem_limit = int(min(max(32 * 1024 * 1024, need * 3 // 2), 100 * 1024 * 1024))

    cost = pl.CostEstimate(
        flops=2 * N * HoP * Wo * 9 * C * Cout,
        transcendentals=0,
        bytes_accessed=(xrows.size * 2 + wtaps.size * 2 + Cout * 4
                        + N * HoP * Wo * Cout * itemsize),
    )

    out_flat = pl.pallas_call(
        _downsample_kernel,
        out_shape=jax.ShapeDtypeStruct((N * HoP * Wo, Cout), out_dtype),
        grid_spec=pltpu.PrefetchScalarGridSpec(
            num_scalar_prefetch=0,
            grid=(N, n_row_tiles),
            in_specs=[
                # streamed: the 3 kernel-row slices for this (sample, row tile)
                pl.BlockSpec((3, None, tho, Wo1, 2 * C),
                             lambda n, i: (0, n, i, 0, 0)),
                # resident weight / bias
                pl.BlockSpec((3, 3, C, Cout), lambda n, i: (0, 0, 0, 0)),
                pl.BlockSpec((1, Cout), lambda n, i: (0, 0)),
            ],
            out_specs=pl.BlockSpec((tho * Wo, Cout),
                                   lambda n, i: (n * n_row_tiles + i, 0)),
        ),
        compiler_params=pltpu.CompilerParams(
            dimension_semantics=("parallel", "parallel"),
            vmem_limit_bytes=vmem_limit,
        ),
        cost_estimate=cost,
    )(xrows, wtaps, brow)

    out = out_flat.reshape(N, HoP, Wo, Cout)[:, :Ho]
    # TODO(synk): the NCHW<->NHWC transposes around the kernel are kept only to
    # match the PyTorch layout; drop them if the surrounding model runs NHWC.
    return jnp.transpose(out, (0, 3, 1, 2))


def _reference(x_nchw, weight, bias):
    y = jax.lax.conv_general_dilated(
        x_nchw, weight,
        window_strides=(2, 2), padding=((1, 1), (1, 1)),
        dimension_numbers=("NCHW", "OIHW", "NCHW"))
    y = y + bias.reshape(1, -1, 1, 1)
    return jnp.where(y >= 0, y, NEG_SLOPE * y)


if __name__ == "__main__":
    key = jax.random.PRNGKey(0)
    kx, kw, kb = jax.random.split(key, 3)

    N, C, H, W = 2, 4, 16, 16
    x = jax.random.normal(kx, (N, C, H, W), dtype=jnp.float32)

    # Deterministic parameter init (shapes from nn.Conv2d(C, C, 3, 2, 1))
    fan_in = C * 3 * 3
    bound = 1.0 / np.sqrt(fan_in)
    weight = jax.random.uniform(kw, (C, C, 3, 3), jnp.float32, -bound, bound)
    bias = jax.random.uniform(kb, (C,), jnp.float32, -bound, bound)

    out = downsampling_forward(x, weight, bias)
    out = jax.block_until_ready(out)

    ref = jax.block_until_ready(_reference(x, weight, bias))
    assert out.shape == (N, C, H // 2, W // 2), out.shape
    # bf16 matmul operands (f32 accumulation) -> loosened tolerance vs f32 ref.
    np.testing.assert_allclose(np.asarray(out), np.asarray(ref),
                               rtol=3e-2, atol=3e-2)
    print("KERNEL_OK")
</pallas_src>

<mosaic_0001>
module attributes {stable_mosaic.version = 11 : i64} {
  func.func @_downsample_kernel(%arg0: i32, %arg1: i32, %arg2: memref<3x1x8x9x8xbf16, #tpu.memory_space<vmem>>, %arg3: memref<3x3x4x4xbf16, #tpu.memory_space<vmem>>, %arg4: memref<1x4xf32, #tpu.memory_space<vmem>>, %arg5: memref<64x4xf32, #tpu.memory_space<vmem>>) attributes {dimension_semantics = [#tpu.dimension_semantics<parallel>, #tpu.dimension_semantics<parallel>], iteration_bounds = array<i64: 2, 1>, scalar_prefetch = 0 : i64, scratch_operands = 0 : i64, tpu.core_type = #tpu.core_type<tc>, window_params = [{transform_indices = @transform_0, window_bounds = array<i64: 3, 1, 8, 9, 8>}, {pipeline_mode = #tpu.pipeline_mode<synchronous>, transform_indices = @transform_1, window_bounds = array<i64: 3, 3, 4, 4>}, {pipeline_mode = #tpu.pipeline_mode<synchronous>, transform_indices = @transform_2, window_bounds = array<i64: 1, 4>}, {transform_indices = @transform_3, window_bounds = array<i64: 64, 4>}]} {
    %cst = arith.constant 0.000000e+00 : f32
    %0 = vector.broadcast %cst : f32 to vector<64x4xf32>
    %c0 = arith.constant 0 : index
    %c0_0 = arith.constant 0 : index
    %c0_1 = arith.constant 0 : index
    %c0_2 = arith.constant 0 : index
    %c0_3 = arith.constant 0 : index
    %1 = vector.load %arg2[%c0, %c0_0, %c0_1, %c0_2, %c0_3] : memref<3x1x8x9x8xbf16, #tpu.memory_space<vmem>>, vector<1x1x8x8x4xbf16>
    %2 = vector.shape_cast %1 : vector<1x1x8x8x4xbf16> to vector<8x8x4xbf16>
    %3 = vector.shape_cast %2 : vector<8x8x4xbf16> to vector<64x4xbf16>
    %c0_4 = arith.constant 0 : index
    %c0_5 = arith.constant 0 : index
    %c0_6 = arith.constant 0 : index
    %c0_7 = arith.constant 0 : index
    %4 = vector.load %arg3[%c0_4, %c0_5, %c0_6, %c0_7] : memref<3x3x4x4xbf16, #tpu.memory_space<vmem>>, vector<1x1x4x4xbf16>
    %5 = vector.shape_cast %4 : vector<1x1x4x4xbf16> to vector<4x4xbf16>
    %cst_8 = arith.constant dense<0.000000e+00> : vector<64x4xf32>
    %6 = tpu.matmul %3, %5, %cst_8 {dimension_numbers = #tpu.dot_dimension_numbers<[1], [0], [0], [1], [0, 0, 1, 1], [], []>} : vector<64x4xbf16>, vector<4x4xbf16>, vector<64x4xf32> -> vector<64x4xf32>
    %7 = arith.addf %0, %6 : vector<64x4xf32>
    %c0_9 = arith.constant 0 : index
    %c0_10 = arith.constant 0 : index
    %c0_11 = arith.constant 0 : index
    %c0_12 = arith.constant 0 : index
    %c4 = arith.constant 4 : index
    %8 = vector.load %arg2[%c0_9, %c0_10, %c0_11, %c0_12, %c4] : memref<3x1x8x9x8xbf16, #tpu.memory_space<vmem>>, vector<1x1x8x8x4xbf16>
    %9 = vector.shape_cast %8 : vector<1x1x8x8x4xbf16> to vector<8x8x4xbf16>
    %10 = vector.shape_cast %9 : vector<8x8x4xbf16> to vector<64x4xbf16>
    %c0_13 = arith.constant 0 : index
    %c1 = arith.constant 1 : index
    %c0_14 = arith.constant 0 : index
    %c0_15 = arith.constant 0 : index
    %11 = vector.load %arg3[%c0_13, %c1, %c0_14, %c0_15] : memref<3x3x4x4xbf16, #tpu.memory_space<vmem>>, vector<1x1x4x4xbf16>
    %12 = vector.shape_cast %11 : vector<1x1x4x4xbf16> to vector<4x4xbf16>
    %cst_16 = arith.constant dense<0.000000e+00> : vector<64x4xf32>
    %13 = tpu.matmul %10, %12, %cst_16 {dimension_numbers = #tpu.dot_dimension_numbers<[1], [0], [0], [1], [0, 0, 1, 1], [], []>} : vector<64x4xbf16>, vector<4x4xbf16>, vector<64x4xf32> -> vector<64x4xf32>
    %14 = arith.addf %7, %13 : vector<64x4xf32>
    %c0_17 = arith.constant 0 : index
    %c0_18 = arith.constant 0 : index
    %c0_19 = arith.constant 0 : index
    %c1_20 = arith.constant 1 : index
    %c0_21 = arith.constant 0 : index
    %15 = vector.load %arg2[%c0_17, %c0_18, %c0_19, %c1_20, %c0_21] : memref<3x1x8x9x8xbf16, #tpu.memory_space<vmem>>, vector<1x1x8x8x4xbf16>
    %16 = vector.shape_cast %15 : vector<1x1x8x8x4xbf16> to vector<8x8x4xbf16>
    %17 = vector.shape_cast %16 : vector<8x8x4xbf16> to vector<64x4xbf16>
    %c0_22 = arith.constant 0 : index
    %c2 = arith.constant 2 : index
    %c0_23 = arith.constant 0 : index
    %c0_24 = arith.constant 0 : index
    %18 = vector.load %arg3[%c0_22, %c2, %c0_23, %c0_24] : memref<3x3x4x4xbf16, #tpu.memory_space<vmem>>, vector<1x1x4x4xbf16>
    %19 = vector.shape_cast %18 : vector<1x1x4x4xbf16> to vector<4x4xbf16>
    %cst_25 = arith.constant dense<0.000000e+00> : vector<64x4xf32>
    %20 = tpu.matmul %17, %19, %cst_25 {dimension_numbers = #tpu.dot_dimension_numbers<[1], [0], [0], [1], [0, 0, 1, 1], [], []>} : vector<64x4xbf16>, vector<4x4xbf16>, vector<64x4xf32> -> vector<64x4xf32>
    %21 = arith.addf %14, %20 : vector<64x4xf32>
    %c1_26 = arith.constant 1 : index
    %c0_27 = arith.constant 0 : index
    %c0_28 = arith.constant 0 : index
    %c0_29 = arith.constant 0 : index
    %c0_30 = arith.constant 0 : index
    %22 = vector.load %arg2[%c1_26, %c0_27, %c0_28, %c0_29, %c0_30] : memref<3x1x8x9x8xbf16, #tpu.memory_space<vmem>>, vector<1x1x8x8x4xbf16>
    %23 = vector.shape_cast %22 : vector<1x1x8x8x4xbf16> to vector<8x8x4xbf16>
    %24 = vector.shape_cast %23 : vector<8x8x4xbf16> to vector<64x4xbf16>
    %c1_31 = arith.constant 1 : index
    %c0_32 = arith.constant 0 : index
    %c0_33 = arith.constant 0 : index
    %c0_34 = arith.constant 0 : index
    %25 = vector.load %arg3[%c1_31, %c0_32, %c0_33, %c0_34] : memref<3x3x4x4xbf16, #tpu.memory_space<vmem>>, vector<1x1x4x4xbf16>
    %26 = vector.shape_cast %25 : vector<1x1x4x4xbf16> to vector<4x4xbf16>
    %cst_35 = arith.constant dense<0.000000e+00> : vector<64x4xf32>
    %27 = tpu.matmul %24, %26, %cst_35 {dimension_numbers = #tpu.dot_dimension_numbers<[1], [0], [0], [1], [0, 0, 1, 1], [], []>} : vector<64x4xbf16>, vector<4x4xbf16>, vector<64x4xf32> -> vector<64x4xf32>
    %28 = arith.addf %21, %27 : vector<64x4xf32>
    %c1_36 = arith.constant 1 : index
    %c0_37 = arith.constant 0 : index
    %c0_38 = arith.constant 0 : index
    %c0_39 = arith.constant 0 : index
    %c4_40 = arith.constant 4 : index
    %29 = vector.load %arg2[%c1_36, %c0_37, %c0_38, %c0_39, %c4_40] : memref<3x1x8x9x8xbf16, #tpu.memory_space<vmem>>, vector<1x1x8x8x4xbf16>
    %30 = vector.shape_cast %29 : vector<1x1x8x8x4xbf16> to vector<8x8x4xbf16>
    %31 = vector.shape_cast %30 : vector<8x8x4xbf16> to vector<64x4xbf16>
    %c1_41 = arith.constant 1 : index
    %c1_42 = arith.constant 1 : index
    %c0_43 = arith.constant 0 : index
    %c0_44 = arith.constant 0 : index
    %32 = vector.load %arg3[%c1_41, %c1_42, %c0_43, %c0_44] : memref<3x3x4x4xbf16, #tpu.memory_space<vmem>>, vector<1x1x4x4xbf16>
    %33 = vector.shape_cast %32 : vector<1x1x4x4xbf16> to vector<4x4xbf16>
    %cst_45 = arith.constant dense<0.000000e+00> : vector<64x4xf32>
    %34 = tpu.matmul %31, %33, %cst_45 {dimension_numbers = #tpu.dot_dimension_numbers<[1], [0], [0], [1], [0, 0, 1, 1], [], []>} : vector<64x4xbf16>, vector<4x4xbf16>, vector<64x4xf32> -> vector<64x4xf32>
    %35 = arith.addf %28, %34 : vector<64x4xf32>
    %c1_46 = arith.constant 1 : index
    %c0_47 = arith.constant 0 : index
    %c0_48 = arith.constant 0 : index
    %c1_49 = arith.constant 1 : index
    %c0_50 = arith.constant 0 : index
    %36 = vector.load %arg2[%c1_46, %c0_47, %c0_48, %c1_49, %c0_50] : memref<3x1x8x9x8xbf16, #tpu.memory_space<vmem>>, vector<1x1x8x8x4xbf16>
    %37 = vector.shape_cast %36 : vector<1x1x8x8x4xbf16> to vector<8x8x4xbf16>
    %38 = vector.shape_cast %37 : vector<8x8x4xbf16> to vector<64x4xbf16>
    %c1_51 = arith.constant 1 : index
    %c2_52 = arith.constant 2 : index
    %c0_53 = arith.constant 0 : index
    %c0_54 = arith.constant 0 : index
    %39 = vector.load %arg3[%c1_51, %c2_52, %c0_53, %c0_54] : memref<3x3x4x4xbf16, #tpu.memory_space<vmem>>, vector<1x1x4x4xbf16>
    %40 = vector.shape_cast %39 : vector<1x1x4x4xbf16> to vector<4x4xbf16>
    %cst_55 = arith.constant dense<0.000000e+00> : vector<64x4xf32>
    %41 = tpu.matmul %38, %40, %cst_55 {dimension_numbers = #tpu.dot_dimension_numbers<[1], [0], [0], [1], [0, 0, 1, 1], [], []>} : vector<64x4xbf16>, vector<4x4xbf16>, vector<64x4xf32> -> vector<64x4xf32>
    %42 = arith.addf %35, %41 : vector<64x4xf32>
    %c2_56 = arith.constant 2 : index
    %c0_57 = arith.constant 0 : index
    %c0_58 = arith.constant 0 : index
    %c0_59 = arith.constant 0 : index
    %c0_60 = arith.constant 0 : index
    %43 = vector.load %arg2[%c2_56, %c0_57, %c0_58, %c0_59, %c0_60] : memref<3x1x8x9x8xbf16, #tpu.memory_space<vmem>>, vector<1x1x8x8x4xbf16>
    %44 = vector.shape_cast %43 : vector<1x1x8x8x4xbf16> to vector<8x8x4xbf16>
    %45 = vector.shape_cast %44 : vector<8x8x4xbf16> to vector<64x4xbf16>
    %c2_61 = arith.constant 2 : index
    %c0_62 = arith.constant 0 : index
    %c0_63 = arith.constant 0 : index
    %c0_64 = arith.constant 0 : index
    %46 = vector.load %arg3[%c2_61, %c0_62, %c0_63, %c0_64] : memref<3x3x4x4xbf16, #tpu.memory_space<vmem>>, vector<1x1x4x4xbf16>
    %47 = vector.shape_cast %46 : vector<1x1x4x4xbf16> to vector<4x4xbf16>
    %cst_65 = arith.constant dense<0.000000e+00> : vector<64x4xf32>
    %48 = tpu.matmul %45, %47, %cst_65 {dimension_numbers = #tpu.dot_dimension_numbers<[1], [0], [0], [1], [0, 0, 1, 1], [], []>} : vector<64x4xbf16>, vector<4x4xbf16>, vector<64x4xf32> -> vector<64x4xf32>
    %49 = arith.addf %42, %48 : vector<64x4xf32>
    %c2_66 = arith.constant 2 : index
    %c0_67 = arith.constant 0 : index
    %c0_68 = arith.constant 0 : index
    %c0_69 = arith.constant 0 : index
    %c4_70 = arith.constant 4 : index
    %50 = vector.load %arg2[%c2_66, %c0_67, %c0_68, %c0_69, %c4_70] : memref<3x1x8x9x8xbf16, #tpu.memory_space<vmem>>, vector<1x1x8x8x4xbf16>
    %51 = vector.shape_cast %50 : vector<1x1x8x8x4xbf16> to vector<8x8x4xbf16>
    %52 = vector.shape_cast %51 : vector<8x8x4xbf16> to vector<64x4xbf16>
    %c2_71 = arith.constant 2 : index
    %c1_72 = arith.constant 1 : index
    %c0_73 = arith.constant 0 : index
    %c0_74 = arith.constant 0 : index
    %53 = vector.load %arg3[%c2_71, %c1_72, %c0_73, %c0_74] : memref<3x3x4x4xbf16, #tpu.memory_space<vmem>>, vector<1x1x4x4xbf16>
    %54 = vector.shape_cast %53 : vector<1x1x4x4xbf16> to vector<4x4xbf16>
    %cst_75 = arith.constant dense<0.000000e+00> : vector<64x4xf32>
    %55 = tpu.matmul %52, %54, %cst_75 {dimension_numbers = #tpu.dot_dimension_numbers<[1], [0], [0], [1], [0, 0, 1, 1], [], []>} : vector<64x4xbf16>, vector<4x4xbf16>, vector<64x4xf32> -> vector<64x4xf32>
    %56 = arith.addf %49, %55 : vector<64x4xf32>
    %c2_76 = arith.constant 2 : index
    %c0_77 = arith.constant 0 : index
    %c0_78 = arith.constant 0 : index
    %c1_79 = arith.constant 1 : index
    %c0_80 = arith.constant 0 : index
    %57 = vector.load %arg2[%c2_76, %c0_77, %c0_78, %c1_79, %c0_80] : memref<3x1x8x9x8xbf16, #tpu.memory_space<vmem>>, vector<1x1x8x8x4xbf16>
    %58 = vector.shape_cast %57 : vector<1x1x8x8x4xbf16> to vector<8x8x4xbf16>
    %59 = vector.shape_cast %58 : vector<8x8x4xbf16> to vector<64x4xbf16>
    %c2_81 = arith.constant 2 : index
    %c2_82 = arith.constant 2 : index
    %c0_83 = arith.constant 0 : index
    %c0_84 = arith.constant 0 : index
    %60 = vector.load %arg3[%c2_81, %c2_82, %c0_83, %c0_84] : memref<3x3x4x4xbf16, #tpu.memory_space<vmem>>, vector<1x1x4x4xbf16>
    %61 = vector.shape_cast %60 : vector<1x1x4x4xbf16> to vector<4x4xbf16>
    %cst_85 = arith.constant dense<0.000000e+00> : vector<64x4xf32>
    %62 = tpu.matmul %59, %61, %cst_85 {dimension_numbers = #tpu.dot_dimension_numbers<[1], [0], [0], [1], [0, 0, 1, 1], [], []>} : vector<64x4xbf16>, vector<4x4xbf16>, vector<64x4xf32> -> vector<64x4xf32>
    %63 = arith.addf %56, %62 : vector<64x4xf32>
    %c0_86 = arith.constant 0 : index
    %c0_87 = arith.constant 0 : index
    %64 = vector.load %arg4[%c0_86, %c0_87] : memref<1x4xf32, #tpu.memory_space<vmem>>, vector<1x4xf32>
    %65 = vector.broadcast %64 : vector<1x4xf32> to vector<64x4xf32>
    %66 = arith.addf %63, %65 : vector<64x4xf32>
    %cst_88 = arith.constant 0.00999999977 : f32
    %67 = vector.broadcast %cst_88 : f32 to vector<64x4xf32>
    %68 = arith.mulf %67, %66 : vector<64x4xf32>
    %69 = arith.maximumf %66, %68 : vector<64x4xf32>
    %c0_89 = arith.constant 0 : index
    %c0_90 = arith.constant 0 : index
    %70 = vector.load %arg5[%c0_89, %c0_90] : memref<64x4xf32, #tpu.memory_space<vmem>>, vector<64x4xf32>
    tpu.vector_store %arg5[%c0_89, %c0_90], %69 {strides = array<i32>} : memref<64x4xf32, #tpu.memory_space<vmem>>, vector<64x4xf32>,
    return
  }
  func.func @transform_0(%arg0: i32, %arg1: i32) -> (i32, i32, i32, i32, i32) {
    %c0_i32 = arith.constant 0 : i32
    %c0_i32_0 = arith.constant 0 : i32
    %c0_i32_1 = arith.constant 0 : i32
    %c0_i32_2 = arith.constant 0 : i32
    return %c0_i32, %arg0, %arg1, %c0_i32_0, %c0_i32_1 : i32, i32, i32, i32, i32
  }
  func.func @transform_1(%arg0: i32, %arg1: i32) -> (i32, i32, i32, i32) {
    %c0_i32 = arith.constant 0 : i32
    %c0_i32_0 = arith.constant 0 : i32
    %c0_i32_1 = arith.constant 0 : i32
    %c0_i32_2 = arith.constant 0 : i32
    %c0_i32_3 = arith.constant 0 : i32
    return %c0_i32, %c0_i32_0, %c0_i32_1, %c0_i32_2 : i32, i32, i32, i32
  }
  func.func @transform_2(%arg0: i32, %arg1: i32) -> (i32, i32) {
    %c0_i32 = arith.constant 0 : i32
    %c0_i32_0 = arith.constant 0 : i32
    %c0_i32_1 = arith.constant 0 : i32
    return %c0_i32, %c0_i32_0 : i32, i32
  }
  func.func @transform_3(%arg0: i32, %arg1: i32) -> (i32, i32) {
    %c1_i32 = arith.constant 1 : i32
    %0 = arith.muli %arg0, %c1_i32 : i32
    %1 = arith.addi %0, %arg1 : i32
    %c0_i32 = arith.constant 0 : i32
    %c0_i32_0 = arith.constant 0 : i32
    return %1, %c0_i32 : i32, i32
  }
}

</mosaic_0001>

<llo_original>
// kernel: tpu_custom_call.1
$region0: #{tpu_custom_call.1}
  #allocation0 [shape = 'u32[]', space=smem, size = 0x4, offset = 0x4, fixed_abs, tag = 'smem constant byte address 0x4 - core index']
  #allocation1 [shape = 'u32[72,128]{1,0:T(1,128)}', space=vmem, size = 0x9000, scoped, tag = 'internal scratch']
  %s0 = inlined_call_operand.vmem [shape: bf16[3,2,8,9,8], index: 0, kind: input, shape index: {}]
  %s1 = inlined_call_operand.vmem [shape: bf16[3,3,4,4], index: 1, kind: input, shape index: {}]
  %s2 = inlined_call_operand.vmem [shape: f32[1,4], index: 2, kind: input, shape index: {}]
  %s3 = inlined_call_operand.vmem [shape: f32[128,4], index: 3, kind: output, shape index: {}]
  %s4 = sld [smem:[#allocation0]]
  $region86: #{tpu_custom_call.1} parent=0
    _
  %s6 = ssub.s32 1, %s4
  %s7 = scalar_select 0, %s6, %s4
  $region1: #{tpu_custom_call.1} parent=0
    #allocation2 [shape = 'u8[196608]{0}', space=vmem, size = 0x30000, scoped, tag = 'input window, operand 0']
    loop: start=0, step=1, limit=4
    $region2: #{tpu_custom_call.1} parent=1 // loop_pre_header
      _
    $region3: #{tpu_custom_call.1} parent=1 // loop_header
      %s9 = sphi 0, %s13
      %p10 = scmp.ge.s32.totalorder %s9, 4
      %s16 = sphi 0, %s28
      %s17 = sphi 0, %s24
      %s18 = sphi 0, %s16
      %s19 = sphi 0, %s17
      %s20 = sphi 0, %s18
      %s21 = sphi 0, %s19
      %s33 = sphi 0, %s35
      %s36 = sphi 0, %s33
      %s37 = sphi 0, %s36
      %s53 = sphi 0, %s37
      %s57 = sphi 0, %s57
      %s59 = sphi 0, %s57
      %s60 = sphi 0, %s59
      %s74 = sphi 0, %s60
      %s78 = sphi 0, %s78
      %s80 = sphi 0, %s78
      %s81 = sphi 0, %s80
      %s95 = sphi 0, %s81
      %s103 = sphi 0, %s105
      %s106 = sphi 0, %s103
      %s107 = sphi 0, %s106
      %s123 = sphi 0, %s107
    $region4: #{tpu_custom_call.1} parent=1 // loop_header_branch
      %12 = sbr.rel (%p10) target = $region8
    $region5: #{tpu_custom_call.1} parent=1 // loop_body
      %s14 = ssub.s32 %s9, 1
      %s15 = ssub.s32 %s9, 2
      %s22 = sadd.s32 1, %s17
      %p23 = scmp.ge.s32.totalorder %s22, 1
      %s24 = scalar_select %p23, 0, %s22
      %s25 = sadd.s32 1, %s16
      %s26 = scalar_select %p23, %s25, %s16
      %p27 = scmp.ge.s32.totalorder %s26, 2
      %s28 = scalar_select %p27, 0, %s26
      %s29 = ssub.s32 %s16, %s28
      %s30 = ssub.s32 %s17, %s24
      %s31 = sor.u32 %s29, %s30
      %p32 = scmp.eq.s32.totalorder %s31, 0
      %s34 = sadd.s32 %s33, 1
      %s35 = scalar_select %p32, %s33, %s34
      %p38 = pneg %p32
      %p39 = scmp.eq.s32.totalorder %s9, 1
      %p40 = por %p38, %p39
      %p41 = scmp.ne.s32.totalorder %s33, %s36
      %p42 = scmp.eq.s32.totalorder %s9, 0
      %p43 = por %p41, %p42
      %p44 = scmp.ne.s32.totalorder %s33, %s36
      %p45 = scmp.eq.s32.totalorder %s14, 1
      %p46 = por %p44, %p45
      %p47 = scmp.ne.s32.totalorder %s36, %s37
      %p48 = scmp.eq.s32.totalorder %s14, 0
      %p49 = por %p47, %p48
      %p50 = scmp.ne.s32.totalorder %s36, %s37
      %p51 = scmp.eq.s32.totalorder %s15, 1
      %p52 = por %p50, %p51
      %p54 = scmp.ne.s32.totalorder %s37, %s53
      %p55 = scmp.eq.s32.totalorder %s15, 0
      %p56 = por %p54, %p55
      %s58 = sadd.s32 %s57, 1
      %p61 = scmp.eq.s32.totalorder %s9, 1
      %p62 = scmp.ne.s32.totalorder %s57, %s59
      %p63 = scmp.eq.s32.totalorder %s9, 0
      %p64 = por %p62, %p63
      %p65 = scmp.ne.s32.totalorder %s57, %s59
      %p66 = scmp.eq.s32.totalorder %s14, 1
      %p67 = por %p65, %p66
      %p68 = scmp.ne.s32.totalorder %s59, %s60
      %p69 = scmp.eq.s32.totalorder %s14, 0
      %p70 = por %p68, %p69
      %p71 = scmp.ne.s32.totalorder %s59, %s60
      %p72 = scmp.eq.s32.totalorder %s15, 1
      %p73 = por %p71, %p72
      %p75 = scmp.ne.s32.totalorder %s60, %s74
      %p76 = scmp.eq.s32.totalorder %s15, 0
      %p77 = por %p75, %p76
      %s79 = sadd.s32 %s78, 1
      %p82 = scmp.eq.s32.totalorder %s9, 1
      %p83 = scmp.ne.s32.totalorder %s78, %s80
      %p84 = scmp.eq.s32.totalorder %s9, 0
      %p85 = por %p83, %p84
      %p86 = scmp.ne.s32.totalorder %s78, %s80
      %p87 = scmp.eq.s32.totalorder %s14, 1
      %p88 = por %p86, %p87
      %p89 = scmp.ne.s32.totalorder %s80, %s81
      %p90 = scmp.eq.s32.totalorder %s14, 0
      %p91 = por %p89, %p90
      %p92 = scmp.ne.s32.totalorder %s80, %s81
      %p93 = scmp.eq.s32.totalorder %s15, 1
      %p94 = por %p92, %p93
      %p96 = scmp.ne.s32.totalorder %s81, %s95
      %p97 = scmp.eq.s32.totalorder %s15, 0
      %p98 = por %p96, %p97
      %s99 = sadd.s32 %s16, %s17
      %s100 = sadd.s32 %s28, %s24
      %s101 = ssub.s32 %s99, %s100
      %p102 = scmp.eq.s32.totalorder %s101, 0
      %s104 = sadd.s32 %s103, 1
      %s105 = scalar_select %p102, %s103, %s104
      %p108 = pneg %p102
      %p109 = scmp.eq.s32.totalorder %s9, 1
      %p110 = por %p108, %p109
      %p111 = scmp.ne.s32.totalorder %s103, %s106
      %p112 = scmp.eq.s32.totalorder %s9, 0
      %p113 = por %p111, %p112
      %p114 = scmp.ne.s32.totalorder %s103, %s106
      %p115 = scmp.eq.s32.totalorder %s14, 1
      %p116 = por %p114, %p115
      %p117 = scmp.ne.s32.totalorder %s106, %s107
      %p118 = scmp.eq.s32.totalorder %s14, 0
      %p119 = por %p117, %p118
      %p120 = scmp.ne.s32.totalorder %s106, %s107
      %p121 = scmp.eq.s32.totalorder %s15, 1
      %p122 = por %p120, %p121
      %p124 = scmp.ne.s32.totalorder %s107, %s123
      %p125 = scmp.eq.s32.totalorder %s15, 0
      %p126 = por %p124, %p125
      %p127 = scmp.le.s32.totalorder 1, %s9
      %p128 = scmp.lt.s32.totalorder %s9, 3
      %p129 = pnand %p127, %p128
      %p130 = pneg %p129
      // Predicated region
      $region9: #{tpu_custom_call.1} parent=5 // pred_check
        _
      $region10: #{tpu_custom_call.1} parent=5 // pred_check_branch
        %132 = sbr.rel (%p129) target = $region12
      $region11: #{tpu_custom_call.1} parent=5 // pred_region
        %s133 = ssub.s32 %s9, 1
        // Predicated region
        $region13: #{tpu_custom_call.1} parent=11 // pred_check
          %p134 = pneg %p70
        $region14: #{tpu_custom_call.1} parent=11 // pred_check_branch
          %136 = sbr.rel (%p134) target = $region16
        $region15: #{tpu_custom_call.1} parent=11 // pred_region
          _
        $region16: #{tpu_custom_call.1} parent=11 // pred_fallthru
          _
        // Predicated region
        $region17: #{tpu_custom_call.1} parent=11 // pred_check
          %p137 = pneg %p91
        $region18: #{tpu_custom_call.1} parent=11 // pred_check_branch
          %139 = sbr.rel (%p137) target = $region20
        $region19: #{tpu_custom_call.1} parent=11 // pred_region
          _
        $region20: #{tpu_custom_call.1} parent=11 // pred_fallthru
          _
      $region12: #{tpu_custom_call.1} parent=5 // pred_fallthru
        _
      %p140 = scmp.lt.s32.totalorder %s9, 2
      // Predicated region
      $region21: #{tpu_custom_call.1} parent=5 // pred_check
        %p141 = pneg %p140
      $region22: #{tpu_custom_call.1} parent=5 // pred_check_branch
        %143 = sbr.rel (%p141) target = $region24
      $region23: #{tpu_custom_call.1} parent=5 // pred_region
        // Predicated region
        $region25: #{tpu_custom_call.1} parent=23 // pred_check
          %p144 = pneg %p43
        $region26: #{tpu_custom_call.1} parent=23 // pred_check_branch
          %146 = sbr.rel (%p144) target = $region28
        $region27: #{tpu_custom_call.1} parent=23 // pred_region
          %s147 = sand.u32 %s33, 1
          %s148 = sand.u32 %s33, 1
          %s149 = smul.addr %s148, 192
          %s150 = scalar_lea.vmem [#allocation2], %s149
          %s151 = smul.u32 8, %s17
          %s152 = smul.addr %s151, 2
          %s153 = smul.addr %s16, 16
          %s154 = sadd.s32 %s152, %s153
          %s155 = smul.addr %s154, 4
          %s156 = scalar_lea.vmem %s0, %s155
          // Predicated region
          $region29: #{tpu_custom_call.1} parent=27 // pred_check
            _
          $region30: #{tpu_custom_call.1} parent=27 // pred_check_branch
            %158 = sbr.rel (0) target = $region32
          $region31: #{tpu_custom_call.1} parent=27 // pred_region
            // Predicated region
            $region33: #{tpu_custom_call.1} parent=31 // pred_check
              _
            $region34: #{tpu_custom_call.1} parent=31 // pred_check_branch
              %160 = sbr.rel target = $region36
            $region35: #{tpu_custom_call.1} parent=31 // pred_region
              // Predicated region
              $region48: #{tpu_custom_call.1} parent=35 // pred_check
                _
              $region49: #{tpu_custom_call.1} parent=35 // pred_check_branch
                %270 = sbr.rel (0) target = $region51
              $region50: #{tpu_custom_call.1} parent=35 // pred_region
                loop: start=0, step=1, limit=1
                $region52: #{tpu_custom_call.1} parent=50 // loop_pre_header
                  _
                $region53: #{tpu_custom_call.1} parent=50 // loop_header
                  %s272 = sphi 0, %s276
                  %p273 = scmp.ge.s32.totalorder %s272, 1
                  %s277 = sphi %s156, %s156
                  %s278 = sphi %s150, %s150
                $region54: #{tpu_custom_call.1} parent=50 // loop_header_branch
                  %275 = sbr.rel (%p273) target = $region58
                $region55: #{tpu_custom_call.1} parent=50 // loop_body
                  _
                $region56: #{tpu_custom_call.1} parent=50 // loop_footer
                  %s276 = sadd.s32 1, %s272
                $region57: #{tpu_custom_call.1} parent=50 // loop_footer_branch
                  %271 = sbr.rel target = $region53
                $region58: #{tpu_custom_call.1} parent=50 // loop_exit
                  _
                %s280 = ssub.s32 16, 1
                loop: start=0, step=1, limit=1
                $region59: #{tpu_custom_call.1} parent=50 // loop_pre_header
                  _
                $region60: #{tpu_custom_call.1} parent=50 // loop_header
                  %s282 = sphi 0, %s286
                  %p283 = scmp.ge.s32.totalorder %s282, 1
                  %s287 = sphi %s156, %s156
                  %s288 = sphi %s150, %s150
                $region61: #{tpu_custom_call.1} parent=50 // loop_header_branch
                  %285 = sbr.rel (%p283) target = $region65
                $region62: #{tpu_custom_call.1} parent=50 // loop_body
                  %v289 = vld [vmem:[%s287] sm:%s280]
                  %290 = vst [vmem:[%s288] sm:%s280] %v289
                  %v291 = vld [vmem:[%s287 + $0x4] sm:%s280]
                  %292 = vst [vmem:[%s288 + $0x4] sm:%s280] %v291
                  %v293 = vld [vmem:[%s287 + $0x8] sm:%s280]
                  %294 = vst [vmem:[%s288 + $0x8] sm:%s280] %v293
                  %v295 = vld [vmem:[%s287 + $0xc] sm:%s280]
                  %296 = vst [vmem:[%s288 + $0xc] sm:%s280] %v295
                  %v297 = vld [vmem:[%s287 + $0x10] sm:%s280]
                  %298 = vst [vmem:[%s288 + $0x10] sm:%s280] %v297
                  %v299 = vld [vmem:[%s287 + $0x14] sm:%s280]
                  %300 = vst [vmem:[%s288 + $0x14] sm:%s280] %v299
                  %v301 = vld [vmem:[%s287 + $0x18] sm:%s280]
                  %302 = vst [vmem:[%s288 + $0x18] sm:%s280] %v301
                  %v303 = vld [vmem:[%s287 + $0x1c] sm:%s280]
                  %304 = vst [vmem:[%s288 + $0x1c] sm:%s280] %v303
                  %v305 = vld [vmem:[%s287 + $0x20] sm:%s280]
                  %306 = vst [vmem:[%s288 + $0x20] sm:%s280] %v305
                  %v307 = vld [vmem:[%s287 + $0x24] sm:%s280]
                  %308 = vst [vmem:[%s288 + $0x24] sm:%s280] %v307
                  %v309 = vld [vmem:[%s287 + $0x28] sm:%s280]
                  %310 = vst [vmem:[%s288 + $0x28] sm:%s280] %v309
                  %v311 = vld [vmem:[%s287 + $0x2c] sm:%s280]
                  %312 = vst [vmem:[%s288 + $0x2c] sm:%s280] %v311
                  %v313 = vld [vmem:[%s287 + $0x30] sm:%s280]
                  %314 = vst [vmem:[%s288 + $0x30] sm:%s280] %v313
                  %v315 = vld [vmem:[%s287 + $0x34] sm:%s280]
                  %316 = vst [vmem:[%s288 + $0x34] sm:%s280] %v315
                  %v317 = vld [vmem:[%s287 + $0x38] sm:%s280]
                  %318 = vst [vmem:[%s288 + $0x38] sm:%s280] %v317
                  %v319 = vld [vmem:[%s287 + $0x3c] sm:%s280]
                  %320 = vst [vmem:[%s288 + $0x3c] sm:%s280] %v319
                  %v321 = vld [vmem:[%s287 + $0x80] sm:%s280]
                  %322 = vst [vmem:[%s288 + $0x40] sm:%s280] %v321
                  %v323 = vld [vmem:[%s287 + $0x84] sm:%s280]
                  %324 = vst [vmem:[%s288 + $0x44] sm:%s280] %v323
                  %v325 = vld [vmem:[%s287 + $0x88] sm:%s280]
                  %326 = vst [vmem:[%s288 + $0x48] sm:%s280] %v325
                  %v327 = vld [vmem:[%s287 + $0x8c] sm:%s280]
                  %328 = vst [vmem:[%s288 + $0x4c] sm:%s280] %v327
                  %v329 = vld [vmem:[%s287 + $0x90] sm:%s280]
                  %330 = vst [vmem:[%s288 + $0x50] sm:%s280] %v329
                  %v331 = vld [vmem:[%s287 + $0x94] sm:%s280]
                  %332 = vst [vmem:[%s288 + $0x54] sm:%s280] %v331
                  %v333 = vld [vmem:[%s287 + $0x98] sm:%s280]
                  %334 = vst [vmem:[%s288 + $0x58] sm:%s280] %v333
                  %v335 = vld [vmem:[%s287 + $0x9c] sm:%s280]
                  %336 = vst [vmem:[%s288 + $0x5c] sm:%s280] %v335
                  %v337 = vld [vmem:[%s287 + $0xa0] sm:%s280]
                  %338 = vst [vmem:[%s288 + $0x60] sm:%s280] %v337
                  %v339 = vld [vmem:[%s287 + $0xa4] sm:%s280]
                  %340 = vst [vmem:[%s288 + $0x64] sm:%s280] %v339
                  %v341 = vld [vmem:[%s287 + $0xa8] sm:%s280]
                  %342 = vst [vmem:[%s288 + $0x68] sm:%s280] %v341
                  %v343 = vld [vmem:[%s287 + $0xac] sm:%s280]
                  %344 = vst [vmem:[%s288 + $0x6c] sm:%s280] %v343
                  %v345 = vld [vmem:[%s287 + $0xb0] sm:%s280]
                  %346 = vst [vmem:[%s288 + $0x70] sm:%s280] %v345
                  %v347 = vld [vmem:[%s287 + $0xb4] sm:%s280]
                  %348 = vst [vmem:[%s288 + $0x74] sm:%s280] %v347
                  %v349 = vld [vmem:[%s287 + $0xb8] sm:%s280]
                  %350 = vst [vmem:[%s288 + $0x78] sm:%s280] %v349
                  %v351 = vld [vmem:[%s287 + $0xbc] sm:%s280]
                  %352 = vst [vmem:[%s288 + $0x7c] sm:%s280] %v351
                  %v353 = vld [vmem:[%s287 + $0x100] sm:%s280]
                  %354 = vst [vmem:[%s288 + $0x80] sm:%s280] %v353
                  %v355 = vld [vmem:[%s287 + $0x104] sm:%s280]
                  %356 = vst [vmem:[%s288 + $0x84] sm:%s280] %v355
                  %v357 = vld [vmem:[%s287 + $0x108] sm:%s280]
                  %358 = vst [vmem:[%s288 + $0x88] sm:%s280] %v357
                  %v359 = vld [vmem:[%s287 + $0x10c] sm:%s280]
                  %360 = vst [vmem:[%s288 + $0x8c] sm:%s280] %v359
                  %v361 = vld [vmem:[%s287 + $0x110] sm:%s280]
                  %362 = vst [vmem:[%s288 + $0x90] sm:%s280] %v361
                  %v363 = vld [vmem:[%s287 + $0x114] sm:%s280]
                  %364 = vst [vmem:[%s288 + $0x94] sm:%s280] %v363
                  %v365 = vld [vmem:[%s287 + $0x118] sm:%s280]
                  %366 = vst [vmem:[%s288 + $0x98] sm:%s280] %v365
                  %v367 = vld [vmem:[%s287 + $0x11c] sm:%s280]
                  %368 = vst [vmem:[%s288 + $0x9c] sm:%s280] %v367
                  %v369 = vld [vmem:[%s287 + $0x120] sm:%s280]
                  %370 = vst [vmem:[%s288 + $0xa0] sm:%s280] %v369
                  %v371 = vld [vmem:[%s287 + $0x124] sm:%s280]
                  %372 = vst [vmem:[%s288 + $0xa4] sm:%s280] %v371
                  %v373 = vld [vmem:[%s287 + $0x128] sm:%s280]
                  %374 = vst [vmem:[%s288 + $0xa8] sm:%s280] %v373
                  %v375 = vld [vmem:[%s287 + $0x12c] sm:%s280]
                  %376 = vst [vmem:[%s288 + $0xac] sm:%s280] %v375
                  %v377 = vld [vmem:[%s287 + $0x130] sm:%s280]
                  %378 = vst [vmem:[%s288 + $0xb0] sm:%s280] %v377
                  %v379 = vld [vmem:[%s287 + $0x134] sm:%s280]
                  %380 = vst [vmem:[%s288 + $0xb4] sm:%s280] %v379
                  %v381 = vld [vmem:[%s287 + $0x138] sm:%s280]
                  %382 = vst [vmem:[%s288 + $0xb8] sm:%s280] %v381
                  %v383 = vld [vmem:[%s287 + $0x13c] sm:%s280]
                  %384 = vst [vmem:[%s288 + $0xbc] sm:%s280] %v383
                $region63: #{tpu_custom_call.1} parent=50 // loop_footer
                  %s286 = sadd.s32 1, %s282
                $region64: #{tpu_custom_call.1} parent=50 // loop_footer_branch
                  %281 = sbr.rel target = $region60
                $region65: #{tpu_custom_call.1} parent=50 // loop_exit
                  _
              $region51: #{tpu_custom_call.1} parent=35 // pred_fallthru
                _
            $region36: #{tpu_custom_call.1} parent=31 // pred_fallthru
              _
            // Predicated region
            $region37: #{tpu_custom_call.1} parent=31 // pred_check
              _
            $region38: #{tpu_custom_call.1} parent=31 // pred_check_branch
              %162 = sbr.rel (0) target = $region40
            $region39: #{tpu_custom_call.1} parent=31 // pred_region
              %s164 = ssub.s32 16, 1
              loop: start=0, step=1, limit=1
              $region41: #{tpu_custom_call.1} parent=39 // loop_pre_header
                _
              $region42: #{tpu_custom_call.1} parent=39 // loop_header
                %s166 = sphi 0, %s170
                %p167 = scmp.ge.s32.totalorder %s166, 1
                %s171 = sphi %s156, %s156
                %s172 = sphi %s150, %s150
              $region43: #{tpu_custom_call.1} parent=39 // loop_header_branch
                %169 = sbr.rel (%p167) target = $region47
              $region44: #{tpu_custom_call.1} parent=39 // loop_body
                %v173 = vld [vmem:[%s171] sm:%s164]
                %174 = vst [vmem:[%s172] sm:%s164] %v173
                %v175 = vld [vmem:[%s171 + $0x4] sm:%s164]
                %176 = vst [vmem:[%s172 + $0x4] sm:%s164] %v175
                %v177 = vld [vmem:[%s171 + $0x8] sm:%s164]
                %178 = vst [vmem:[%s172 + $0x8] sm:%s164] %v177
                %v179 = vld [vmem:[%s171 + $0xc] sm:%s164]
                %180 = vst [vmem:[%s172 + $0xc] sm:%s164] %v179
                %v181 = vld [vmem:[%s171 + $0x10] sm:%s164]
                %182 = vst [vmem:[%s172 + $0x10] sm:%s164] %v181
                %v183 = vld [vmem:[%s171 + $0x14] sm:%s164]
                %184 = vst [vmem:[%s172 + $0x14] sm:%s164] %v183
                %v185 = vld [vmem:[%s171 + $0x18] sm:%s164]
                %186 = vst [vmem:[%s172 + $0x18] sm:%s164] %v185
                %v187 = vld [vmem:[%s171 + $0x1c] sm:%s164]
                %188 = vst [vmem:[%s172 + $0x1c] sm:%s164] %v187
                %v189 = vld [vmem:[%s171 + $0x20] sm:%s164]
                %190 = vst [vmem:[%s172 + $0x20] sm:%s164] %v189
                %v191 = vld [vmem:[%s171 + $0x24] sm:%s164]
                %192 = vst [vmem:[%s172 + $0x24] sm:%s164] %v191
                %v193 = vld [vmem:[%s171 + $0x28] sm:%s164]
                %194 = vst [vmem:[%s172 + $0x28] sm:%s164] %v193
                %v195 = vld [vmem:[%s171 + $0x2c] sm:%s164]
                %196 = vst [vmem:[%s172 + $0x2c] sm:%s164] %v195
                %v197 = vld [vmem:[%s171 + $0x30] sm:%s164]
                %198 = vst [vmem:[%s172 + $0x30] sm:%s164] %v197
                %v199 = vld [vmem:[%s171 + $0x34] sm:%s164]
                %200 = vst [vmem:[%s172 + $0x34] sm:%s164] %v199
                %v201 = vld [vmem:[%s171 + $0x38] sm:%s164]
                %202 = vst [vmem:[%s172 + $0x38] sm:%s164] %v201
                %v203 = vld [vmem:[%s171 + $0x3c] sm:%s164]
                %204 = vst [vmem:[%s172 + $0x3c] sm:%s164] %v203
                %v205 = vld [vmem:[%s171 + $0x80] sm:%s164]
                %206 = vst [vmem:[%s172 + $0x40] sm:%s164] %v205
                %v207 = vld [vmem:[%s171 + $0x84] sm:%s164]
                %208 = vst [vmem:[%s172 + $0x44] sm:%s164] %v207
                %v209 = vld [vmem:[%s171 + $0x88] sm:%s164]
                %210 = vst [vmem:[%s172 + $0x48] sm:%s164] %v209
                %v211 = vld [vmem:[%s171 + $0x8c] sm:%s164]
                %212 = vst [vmem:[%s172 + $0x4c] sm:%s164] %v211
                %v213 = vld [vmem:[%s171 + $0x90] sm:%s164]
                %214 = vst [vmem:[%s172 + $0x50] sm:%s164] %v213
                %v215 = vld [vmem:[%s171 + $0x94] sm:%s164]
                %216 = vst [vmem:[%s172 + $0x54] sm:%s164] %v215
                %v217 = vld [vmem:[%s171 + $0x98] sm:%s164]
                %218 = vst [vmem:[%s172 + $0x58] sm:%s164] %v217
                %v219 = vld [vmem:[%s171 + $0x9c] sm:%s164]
                %220 = vst [vmem:[%s172 + $0x5c] sm:%s164] %v219
                %v221 = vld [vmem:[%s171 + $0xa0] sm:%s164]
                %222 = vst [vmem:[%s172 + $0x60] sm:%s164] %v221
                %v223 = vld [vmem:[%s171 + $0xa4] sm:%s164]
                %224 = vst [vmem:[%s172 + $0x64] sm:%s164] %v223
                %v225 = vld [vmem:[%s171 + $0xa8] sm:%s164]
                %226 = vst [vmem:[%s172 + $0x68] sm:%s164] %v225
                %v227 = vld [vmem:[%s171 + $0xac] sm:%s164]
                %228 = vst [vmem:[%s172 + $0x6c] sm:%s164] %v227
                %v229 = vld [vmem:[%s171 + $0xb0] sm:%s164]
                %230 = vst [vmem:[%s172 + $0x70] sm:%s164] %v229
                %v231 = vld [vmem:[%s171 + $0xb4] sm:%s164]
                %232 = vst [vmem:[%s172 + $0x74] sm:%s164] %v231
                %v233 = vld [vmem:[%s171 + $0xb8] sm:%s164]
                %234 = vst [vmem:[%s172 + $0x78] sm:%s164] %v233
                %v235 = vld [vmem:[%s171 + $0xbc] sm:%s164]
                %236 = vst [vmem:[%s172 + $0x7c] sm:%s164] %v235
                %v237 = vld [vmem:[%s171 + $0x100] sm:%s164]
                %238 = vst [vmem:[%s172 + $0x80] sm:%s164] %v237
                %v239 = vld [vmem:[%s171 + $0x104] sm:%s164]
                %240 = vst [vmem:[%s172 + $0x84] sm:%s164] %v239
                %v241 = vld [vmem:[%s171 + $0x108] sm:%s164]
                %242 = vst [vmem:[%s172 + $0x88] sm:%s164] %v241
                %v243 = vld [vmem:[%s171 + $0x10c] sm:%s164]
                %244 = vst [vmem:[%s172 + $0x8c] sm:%s164] %v243
                %v245 = vld [vmem:[%s171 + $0x110] sm:%s164]
                %246 = vst [vmem:[%s172 + $0x90] sm:%s164] %v245
                %v247 = vld [vmem:[%s171 + $0x114] sm:%s164]
                %248 = vst [vmem:[%s172 + $0x94] sm:%s164] %v247
                %v249 = vld [vmem:[%s171 + $0x118] sm:%s164]
                %250 = vst [vmem:[%s172 + $0x98] sm:%s164] %v249
                %v251 = vld [vmem:[%s171 + $0x11c] sm:%s164]
                %252 = vst [vmem:[%s172 + $0x9c] sm:%s164] %v251
                %v253 = vld [vmem:[%s171 + $0x120] sm:%s164]
                %254 = vst [vmem:[%s172 + $0xa0] sm:%s164] %v253
                %v255 = vld [vmem:[%s171 + $0x124] sm:%s164]
                %256 = vst [vmem:[%s172 + $0xa4] sm:%s164] %v255
                %v257 = vld [vmem:[%s171 + $0x128] sm:%s164]
                %258 = vst [vmem:[%s172 + $0xa8] sm:%s164] %v257
                %v259 = vld [vmem:[%s171 + $0x12c] sm:%s164]
                %260 = vst [vmem:[%s172 + $0xac] sm:%s164] %v259
                %v261 = vld [vmem:[%s171 + $0x130] sm:%s164]
                %262 = vst [vmem:[%s172 + $0xb0] sm:%s164] %v261
                %v263 = vld [vmem:[%s171 + $0x134] sm:%s164]
                %264 = vst [vmem:[%s172 + $0xb4] sm:%s164] %v263
                %v265 = vld [vmem:[%s171 + $0x138] sm:%s164]
                %266 = vst [vmem:[%s172 + $0xb8] sm:%s164] %v265
                %v267 = vld [vmem:[%s171 + $0x13c] sm:%s164]
                %268 = vst [vmem:[%s172 + $0xbc] sm:%s164] %v267
              $region45: #{tpu_custom_call.1} parent=39 // loop_footer
                %s170 = sadd.s32 1, %s166
              $region46: #{tpu_custom_call.1} parent=39 // loop_footer_branch
                %165 = sbr.rel target = $region42
              $region47: #{tpu_custom_call.1} parent=39 // loop_exit
                _
            $region40: #{tpu_custom_call.1} parent=31 // pred_fallthru
              _
          $region32: #{tpu_custom_call.1} parent=27 // pred_fallthru
            _
          %385 = vnop
        $region28: #{tpu_custom_call.1} parent=23 // pred_fallthru
          _
      $region24: #{tpu_custom_call.1} parent=5 // pred_fallthru
        _
      %p386 = scmp.le.s32.totalorder 1, %s9
      %p387 = scmp.lt.s32.totalorder %s9, 3
      %p388 = pnand %p386, %p387
      %p389 = pneg %p388
      // Predicated region
      $region66: #{tpu_custom_call.1} parent=5 // pred_check
        _
      $region67: #{tpu_custom_call.1} parent=5 // pred_check_branch
        %391 = sbr.rel (%p388) target = $region69
      $region68: #{tpu_custom_call.1} parent=5 // pred_region
        %s392 = ssub.s32 %s9, 1
        %s393 = sand.u32 %s36, 1
        %s394 = sand.u32 %s36, 1
        %s395 = smul.addr %s394, 192
        %s396 = scalar_lea.vmem [#allocation2], %s395
        // Predicated region
        $region70: #{tpu_custom_call.1} parent=68 // pred_check
          %p397 = pneg %p49
        $region71: #{tpu_custom_call.1} parent=68 // pred_check_branch
          %399 = sbr.rel (%p397) target = $region73
        $region72: #{tpu_custom_call.1} parent=68 // pred_region
          _
        $region73: #{tpu_custom_call.1} parent=68 // pred_fallthru
          _
        %s400 = sand.u32 %s36, 1
        %s401 = sand.u32 %s36, 1
        %s402 = smul.addr %s401, 192
        %s403 = scalar_lea.vmem [#allocation2], %s402
        %p404 = pneg %p49
        %p405 = pneg %p46
        %p406 = pneg %p70
        %p407 = pneg %p67
        %p408 = pneg %p91
        %p409 = pneg %p88
        %p410 = pneg %p119
        %p411 = pneg %p116
        %s412 = sadd.s32 %s18, %s19
        %s413 = smul.u32 8, %s412
        %p414 = scmp.lt.s32.totalorder %s413, 15
        %s415 = scalar_select %p414, %s413, 15
        %s416 = smul.addr %s415, 8
        %s417 = scalar_lea.vmem %s3, %s416
        %s418 = smul.u32 8, %s19
        %s419 = sadd.s32 %s18, %s19
        %s420 = smul.u32 8, %s419
        %p421 = scmp.lt.s32.totalorder %s420, 15
        %s422 = scalar_select %p421, %s420, 15
        %s423 = smul.addr %s422, 8
        %s424 = scalar_lea.vmem %s3, %s423
        %s425 = sadd.s32 %s18, %s19
        %s426 = smul.u32 8, %s425
        %v428 = vld [vmem:[%s396] sm:$0xf]
        %v429 = vld [vmem:[%s396 + $0x8] sm:$0xf]
        %v430 = vld [vmem:[%s396 + $0x10] sm:$0xf]
        %v431 = vld [vmem:[%s396 + $0x18] sm:$0xf]
        %v432 = vld [vmem:[%s396 + $0x20] sm:$0xf]
        %v433 = vld [vmem:[%s396 + $0x28] sm:$0xf]
        %v434 = vld [vmem:[%s396 + $0x30] sm:$0xf]
        %v435 = vld [vmem:[%s396 + $0x38] sm:$0xf]
        %v436 = vld [vmem:[%s1] sm:$0x3]
        %s437 = scalar_lea.vmem %s1, 2
        %v438 = vld [vmem:[%s437] sm:$0x3]
        %v447 = vunpack.c.l.b16 %v428
        %v448 = vunpack.c.l.b16 %v429
        %v449 = vunpack.c.l.b16 %v430
        %v450 = vunpack.c.l.b16 %v431
        %v451 = vunpack.c.l.b16 %v432
        %v452 = vunpack.c.l.b16 %v433
        %v453 = vunpack.c.l.b16 %v434
        %v454 = vunpack.c.l.b16 %v435
        %v455 = vpack.c.b16 %v448, %v447
        %v456 = vpack.c.b16 %v450, %v449
        %v457 = vpack.c.b16 %v452, %v451
        %v458 = vpack.c.b16 %v454, %v453
        %459 = vrot.lane.b32.xlu0 %v455, 124
        %v460 = vpop.permute.xlu0 %459
        %461 = vrot.lane.b32.xlu0 %v456, 124
        %v462 = vpop.permute.xlu0 %461
        %463 = vrot.lane.b32.xlu0 %v457, 124
        %v464 = vpop.permute.xlu0 %463
        %465 = vrot.lane.b32.xlu0 %v458, 124
        %v466 = vpop.permute.xlu0 %465
        %vm467 = vcmask 31744
        %v469 = vsel %vm467, %v460, 0
        %v472 = vsel %vm467, %v462, 0
        %v475 = vsel %vm467, %v464, 0
        %v478 = vsel %vm467, %v466, 0
        %vm480 = vcmask 1041408
        %v482 = vsel %vm480, %v438, 0
        %484 = vmatpush.bf16.msra.mxu0 0
        %485 = vmatpush.bf16.msra.mxu0 0
        %486 = vmatpush.bf16.msra.mxu0 0
        %487 = vmatpush.bf16.msra.mxu0 0
        %488 = vmatpush.bf16.msra.mxu0 0
        %489 = vmatpush.bf16.msra.mxu0 0
        %490 = vmatpush.bf16.msra.mxu0 0
        %491 = vmatpush.bf16.msra.mxu0 %v482
        %492 = vmatmul.bf16.gmra.mxu0 %v469
        %v493 = vpop.f32.mrf.mxu0
        %v494 = vadd.f32 0.0, %v493
        %v495 = vpop.f32.mrf.mxu0
        %v496 = vadd.f32 0.0, %v495
        %497 = vmatmul.bf16.gmra.mxu0 %v472
        %v498 = vpop.f32.mrf.mxu0
        %v499 = vadd.f32 0.0, %v498
        %v500 = vpop.f32.mrf.mxu0
        %v501 = vadd.f32 0.0, %v500
        %502 = vmatmul.bf16.gmra.mxu0 %v475
        %v503 = vpop.f32.mrf.mxu0
        %v504 = vadd.f32 0.0, %v503
        %v505 = vpop.f32.mrf.mxu0
        %v506 = vadd.f32 0.0, %v505
        %507 = vmatmul.bf16.gmra.mxu0 %v478
        %v508 = vpop.f32.mrf.mxu0
        %v509 = vadd.f32 0.0, %v508
        %v510 = vpop.f32.mrf.mxu0
        %v511 = vadd.f32 0.0, %v510
        %512 = vdwg.mxu0
        %v514 = vsel %vm467, %v455, 0
        %v517 = vsel %vm467, %v456, 0
        %v520 = vsel %vm467, %v457, 0
        %v523 = vsel %vm467, %v458, 0
        %v526 = vsel %vm480, %v436, 0
        %528 = vmatpush.bf16.msra.mxu0 0
        %529 = vmatpush.bf16.msra.mxu0 0
        %530 = vmatpush.bf16.msra.mxu0 0
        %531 = vmatpush.bf16.msra.mxu0 0
        %532 = vmatpush.bf16.msra.mxu0 0
        %533 = vmatpush.bf16.msra.mxu0 0
        %534 = vmatpush.bf16.msra.mxu0 0
        %535 = vmatpush.bf16.msra.mxu0 %v526
        %536 = vmatmul.bf16.gmra.mxu0 %v514
        %v537 = vpop.f32.mrf.mxu0
        %v538 = vadd.f32 %v494, %v537
        %v539 = vpop.f32.mrf.mxu0
        %v540 = vadd.f32 %v496, %v539
        %541 = vmatmul.bf16.gmra.mxu0 %v517
        %v542 = vpop.f32.mrf.mxu0
        %v543 = vadd.f32 %v499, %v542
        %v544 = vpop.f32.mrf.mxu0
        %v545 = vadd.f32 %v501, %v544
        %546 = vmatmul.bf16.gmra.mxu0 %v520
        %v547 = vpop.f32.mrf.mxu0
        %v548 = vadd.f32 %v504, %v547
        %v549 = vpop.f32.mrf.mxu0
        %v550 = vadd.f32 %v506, %v549
        %551 = vmatmul.bf16.gmra.mxu0 %v523
        %v552 = vpop.f32.mrf.mxu0
        %v553 = vadd.f32 %v509, %v552
        %v554 = vpop.f32.mrf.mxu0
        %v555 = vadd.f32 %v511, %v554
        %556 = vdwg.mxu0
        %v557 = vld [vmem:[%s396] sm:$0xf]
        %v558 = vld [vmem:[%s396 + $0x4] sm:$0x1]
        %v559 = vld [vmem:[%s396 + $0x8] sm:$0xf]
        %v560 = vld [vmem:[%s396 + $0xc] sm:$0x1]
        %v561 = vld [vmem:[%s396 + $0x10] sm:$0xf]
        %v562 = vld [vmem:[%s396 + $0x14] sm:$0x1]
        %v563 = vld [vmem:[%s396 + $0x18] sm:$0xf]
        %v564 = vld [vmem:[%s396 + $0x1c] sm:$0x1]
        %v565 = vld [vmem:[%s396 + $0x20] sm:$0xf]
        %v566 = vld [vmem:[%s396 + $0x24] sm:$0x1]
        %v567 = vld [vmem:[%s396 + $0x28] sm:$0xf]
        %v568 = vld [vmem:[%s396 + $0x2c] sm:$0x1]
        %v569 = vld [vmem:[%s396 + $0x30] sm:$0xf]
        %v570 = vld [vmem:[%s396 + $0x34] sm:$0x1]
        %v571 = vld [vmem:[%s396 + $0x38] sm:$0xf]
        %v572 = vld [vmem:[%s396 + $0x3c] sm:$0x1]
        %vm573 = vsmask.f32 3328
        %vm574 = vsmask.f32 7440
        %vm575 = vmor %vm573, %vm574
        %v577 = vshrl.u32 %v557, 16
        %v579 = vrot.slane %v577, 4
        %v580 = vshll.u32 %v557, 16
        %v582 = vrot.slane %v580, 5
        %v583 = vor.u32 %v579, %v582
        %v584 = vrot.slane %v583, 4
        %v586 = vshll.u32 %v558, 16
        %v588 = vrot.slane %v586, 5
        %v589 = vsel %vm575, %v584, %v588
        %v591 = vshrl.u32 %v559, 16
        %v593 = vrot.slane %v591, 4
        %v594 = vshll.u32 %v559, 16
        %v596 = vrot.slane %v594, 5
        %v597 = vor.u32 %v593, %v596
        %v598 = vrot.slane %v597, 4
        %v600 = vshll.u32 %v560, 16
        %v602 = vrot.slane %v600, 5
        %v603 = vsel %vm575, %v598, %v602
        %v605 = vshrl.u32 %v561, 16
        %v607 = vrot.slane %v605, 4
        %v608 = vshll.u32 %v561, 16
        %v610 = vrot.slane %v608, 5
        %v611 = vor.u32 %v607, %v610
        %v612 = vrot.slane %v611, 4
        %v614 = vshll.u32 %v562, 16
        %v616 = vrot.slane %v614, 5
        %v617 = vsel %vm575, %v612, %v616
        %v619 = vshrl.u32 %v563, 16
        %v621 = vrot.slane %v619, 4
        %v622 = vshll.u32 %v563, 16
        %v624 = vrot.slane %v622, 5
        %v625 = vor.u32 %v621, %v624
        %v626 = vrot.slane %v625, 4
        %v628 = vshll.u32 %v564, 16
        %v630 = vrot.slane %v628, 5
        %v631 = vsel %vm575, %v626, %v630
        %v633 = vshrl.u32 %v565, 16
        %v635 = vrot.slane %v633, 4
        %v636 = vshll.u32 %v565, 16
        %v638 = vrot.slane %v636, 5
        %v639 = vor.u32 %v635, %v638
        %v640 = vrot.slane %v639, 4
        %v642 = vshll.u32 %v566, 16
        %v644 = vrot.slane %v642, 5
        %v645 = vsel %vm575, %v640, %v644
        %v647 = vshrl.u32 %v567, 16
        %v649 = vrot.slane %v647, 4
        %v650 = vshll.u32 %v567, 16
        %v652 = vrot.slane %v650, 5
        %v653 = vor.u32 %v649, %v652
        %v654 = vrot.slane %v653, 4
        %v656 = vshll.u32 %v568, 16
        %v658 = vrot.slane %v656, 5
        %v659 = vsel %vm575, %v654, %v658
        %v661 = vshrl.u32 %v569, 16
        %v663 = vrot.slane %v661, 4
        %v664 = vshll.u32 %v569, 16
        %v666 = vrot.slane %v664, 5
        %v667 = vor.u32 %v663, %v666
        %v668 = vrot.slane %v667, 4
        %v670 = vshll.u32 %v570, 16
        %v672 = vrot.slane %v670, 5
        %v673 = vsel %vm575, %v668, %v672
        %v675 = vshrl.u32 %v571, 16
        %v677 = vrot.slane %v675, 4
        %v678 = vshll.u32 %v571, 16
        %v680 = vrot.slane %v678, 5
        %v681 = vor.u32 %v677, %v680
        %v682 = vrot.slane %v681, 4
        %v684 = vshll.u32 %v572, 16
        %v686 = vrot.slane %v684, 5
        %v687 = vsel %vm575, %v682, %v686
        %s688 = scalar_lea.vmem %s1, 4
        %v689 = vld [vmem:[%s688] sm:$0x3]
        %v690 = vunpack.c.l.b16 %v589
        %v691 = vunpack.c.l.b16 %v603
        %v692 = vunpack.c.l.b16 %v617
        %v693 = vunpack.c.l.b16 %v631
        %v694 = vunpack.c.l.b16 %v645
        %v695 = vunpack.c.l.b16 %v659
        %v696 = vunpack.c.l.b16 %v673
        %v697 = vunpack.c.l.b16 %v687
        %v698 = vpack.c.b16 %v691, %v690
        %v699 = vpack.c.b16 %v693, %v692
        %v700 = vpack.c.b16 %v695, %v694
        %v701 = vpack.c.b16 %v697, %v696
        %v703 = vsel %vm467, %v698, 0
        %v706 = vsel %vm467, %v699, 0
        %v709 = vsel %vm467, %v700, 0
        %v712 = vsel %vm467, %v701, 0
        %v715 = vsel %vm480, %v689, 0
        %717 = vmatpush.bf16.msra.mxu0 0
        %718 = vmatpush.bf16.msra.mxu0 0
        %719 = vmatpush.bf16.msra.mxu0 0
        %720 = vmatpush.bf16.msra.mxu0 0
        %721 = vmatpush.bf16.msra.mxu0 0
        %722 = vmatpush.bf16.msra.mxu0 0
        %723 = vmatpush.bf16.msra.mxu0 0
        %724 = vmatpush.bf16.msra.mxu0 %v715
        %725 = vmatmul.bf16.gmra.mxu0 %v703
        %v726 = vpop.f32.mrf.mxu0
        %v727 = vadd.f32 0.0, %v726
        %v728 = vpop.f32.mrf.mxu0
        %v729 = vadd.f32 0.0, %v728
        %730 = vmatmul.bf16.gmra.mxu0 %v706
        %v731 = vpop.f32.mrf.mxu0
        %v732 = vadd.f32 0.0, %v731
        %v733 = vpop.f32.mrf.mxu0
        %v734 = vadd.f32 0.0, %v733
        %735 = vmatmul.bf16.gmra.mxu0 %v709
        %v736 = vpop.f32.mrf.mxu0
        %v737 = vadd.f32 0.0, %v736
        %v738 = vpop.f32.mrf.mxu0
        %v739 = vadd.f32 0.0, %v738
        %740 = vmatmul.bf16.gmra.mxu0 %v712
        %v741 = vpop.f32.mrf.mxu0
        %v742 = vadd.f32 0.0, %v741
        %v743 = vpop.f32.mrf.mxu0
        %v744 = vadd.f32 0.0, %v743
        %745 = vdwg.mxu0
        %v746 = vadd.f32 %v538, %v727
        %v747 = vadd.f32 %v540, %v729
        %v748 = vadd.f32 %v543, %v732
        %v749 = vadd.f32 %v545, %v734
        %v750 = vadd.f32 %v548, %v737
        %v751 = vadd.f32 %v550, %v739
        %v752 = vadd.f32 %v553, %v742
        %v753 = vadd.f32 %v555, %v744
        %s754 = scalar_lea.vmem %s396, 64 [#allocation2]
        %v755 = vld [vmem:[%s754] sm:$0xf]
        %v756 = vld [vmem:[%s754 + $0x8] sm:$0xf]
        %v757 = vld [vmem:[%s754 + $0x10] sm:$0xf]
        %v758 = vld [vmem:[%s754 + $0x18] sm:$0xf]
        %v759 = vld [vmem:[%s754 + $0x20] sm:$0xf]
        %v760 = vld [vmem:[%s754 + $0x28] sm:$0xf]
        %v761 = vld [vmem:[%s754 + $0x30] sm:$0xf]
        %v762 = vld [vmem:[%s754 + $0x38] sm:$0xf]
        %s763 = scalar_lea.vmem %s1, 6
        %v764 = vld [vmem:[%s763] sm:$0x3]
        %v773 = vunpack.c.l.b16 %v755
        %v774 = vunpack.c.l.b16 %v756
        %v775 = vunpack.c.l.b16 %v757
        %v776 = vunpack.c.l.b16 %v758
        %v777 = vunpack.c.l.b16 %v759
        %v778 = vunpack.c.l.b16 %v760
        %v779 = vunpack.c.l.b16 %v761
        %v780 = vunpack.c.l.b16 %v762
        %v781 = vpack.c.b16 %v774, %v773
        %v782 = vpack.c.b16 %v776, %v775
        %v783 = vpack.c.b16 %v778, %v777
        %v784 = vpack.c.b16 %v780, %v779
        %v786 = vsel %vm467, %v781, 0
        %v789 = vsel %vm467, %v782, 0
        %v792 = vsel %vm467, %v783, 0
        %v795 = vsel %vm467, %v784, 0
        %v798 = vsel %vm480, %v764, 0
        %800 = vmatpush.bf16.msra.mxu0 0
        %801 = vmatpush.bf16.msra.mxu0 0
        %802 = vmatpush.bf16.msra.mxu0 0
        %803 = vmatpush.bf16.msra.mxu0 0
        %804 = vmatpush.bf16.msra.mxu0 0
        %805 = vmatpush.bf16.msra.mxu0 0
        %806 = vmatpush.bf16.msra.mxu0 0
        %807 = vmatpush.bf16.msra.mxu0 %v798
        %808 = vmatmul.bf16.gmra.mxu0 %v786
        %v809 = vpop.f32.mrf.mxu0
        %v810 = vadd.f32 0.0, %v809
        %v811 = vpop.f32.mrf.mxu0
        %v812 = vadd.f32 0.0, %v811
        %813 = vmatmul.bf16.gmra.mxu0 %v789
        %v814 = vpop.f32.mrf.mxu0
        %v815 = vadd.f32 0.0, %v814
        %v816 = vpop.f32.mrf.mxu0
        %v817 = vadd.f32 0.0, %v816
        %818 = vmatmul.bf16.gmra.mxu0 %v792
        %v819 = vpop.f32.mrf.mxu0
        %v820 = vadd.f32 0.0, %v819
        %v821 = vpop.f32.mrf.mxu0
        %v822 = vadd.f32 0.0, %v821
        %823 = vmatmul.bf16.gmra.mxu0 %v795
        %v824 = vpop.f32.mrf.mxu0
        %v825 = vadd.f32 0.0, %v824
        %v826 = vpop.f32.mrf.mxu0
        %v827 = vadd.f32 0.0, %v826
        %828 = vdwg.mxu0
        %v829 = vadd.f32 %v746, %v810
        %v830 = vadd.f32 %v747, %v812
        %v831 = vadd.f32 %v748, %v815
        %v832 = vadd.f32 %v749, %v817
        %v833 = vadd.f32 %v750, %v820
        %v834 = vadd.f32 %v751, %v822
        %v835 = vadd.f32 %v752, %v825
        %v836 = vadd.f32 %v753, %v827
        %s837 = scalar_lea.vmem %s1, 8
        %v838 = vld [vmem:[%s837] sm:$0x3]
        %839 = vrot.lane.b32.xlu0 %v781, 124
        %v840 = vpop.permute.xlu0 %839
        %841 = vrot.lane.b32.xlu0 %v782, 124
        %v842 = vpop.permute.xlu0 %841
        %843 = vrot.lane.b32.xlu0 %v783, 124
        %v844 = vpop.permute.xlu0 %843
        %845 = vrot.lane.b32.xlu0 %v784, 124
        %v846 = vpop.permute.xlu0 %845
        %v848 = vsel %vm467, %v840, 0
        %v851 = vsel %vm467, %v842, 0
        %v854 = vsel %vm467, %v844, 0
        %v857 = vsel %vm467, %v846, 0
        %v860 = vsel %vm480, %v838, 0
        %862 = vmatpush.bf16.msra.mxu0 0
        %863 = vmatpush.bf16.msra.mxu0 0
        %864 = vmatpush.bf16.msra.mxu0 0
        %865 = vmatpush.bf16.msra.mxu0 0
        %866 = vmatpush.bf16.msra.mxu0 0
        %867 = vmatpush.bf16.msra.mxu0 0
        %868 = vmatpush.bf16.msra.mxu0 0
        %869 = vmatpush.bf16.msra.mxu0 %v860
        %870 = vmatmul.bf16.gmra.mxu0 %v848
        %v871 = vpop.f32.mrf.mxu0
        %v872 = vadd.f32 0.0, %v871
        %v873 = vpop.f32.mrf.mxu0
        %v874 = vadd.f32 0.0, %v873
        %875 = vmatmul.bf16.gmra.mxu0 %v851
        %v876 = vpop.f32.mrf.mxu0
        %v877 = vadd.f32 0.0, %v876
        %v878 = vpop.f32.mrf.mxu0
        %v879 = vadd.f32 0.0, %v878
        %880 = vmatmul.bf16.gmra.mxu0 %v854
        %v881 = vpop.f32.mrf.mxu0
        %v882 = vadd.f32 0.0, %v881
        %v883 = vpop.f32.mrf.mxu0
        %v884 = vadd.f32 0.0, %v883
        %885 = vmatmul.bf16.gmra.mxu0 %v857
        %v886 = vpop.f32.mrf.mxu0
        %v887 = vadd.f32 0.0, %v886
        %v888 = vpop.f32.mrf.mxu0
        %v889 = vadd.f32 0.0, %v888
        %890 = vdwg.mxu0
        %v891 = vadd.f32 %v829, %v872
        %v892 = vadd.f32 %v830, %v874
        %v893 = vadd.f32 %v831, %v877
        %v894 = vadd.f32 %v832, %v879
        %v895 = vadd.f32 %v833, %v882
        %v896 = vadd.f32 %v834, %v884
        %v897 = vadd.f32 %v835, %v887
        %v898 = vadd.f32 %v836, %v889
        %v899 = vld [vmem:[%s754] sm:$0xf]
        %v900 = vld [vmem:[%s754 + $0x4] sm:$0x1]
        %v901 = vld [vmem:[%s754 + $0x8] sm:$0xf]
        %v902 = vld [vmem:[%s754 + $0xc] sm:$0x1]
        %v903 = vld [vmem:[%s754 + $0x10] sm:$0xf]
        %v904 = vld [vmem:[%s754 + $0x14] sm:$0x1]
        %v905 = vld [vmem:[%s754 + $0x18] sm:$0xf]
        %v906 = vld [vmem:[%s754 + $0x1c] sm:$0x1]
        %v907 = vld [vmem:[%s754 + $0x20] sm:$0xf]
        %v908 = vld [vmem:[%s754 + $0x24] sm:$0x1]
        %v909 = vld [vmem:[%s754 + $0x28] sm:$0xf]
        %v910 = vld [vmem:[%s754 + $0x2c] sm:$0x1]
        %v911 = vld [vmem:[%s754 + $0x30] sm:$0xf]
        %v912 = vld [vmem:[%s754 + $0x34] sm:$0x1]
        %v913 = vld [vmem:[%s754 + $0x38] sm:$0xf]
        %v914 = vld [vmem:[%s754 + $0x3c] sm:$0x1]
        %v916 = vshrl.u32 %v899, 16
        %v918 = vrot.slane %v916, 4
        %v919 = vshll.u32 %v899, 16
        %v921 = vrot.slane %v919, 5
        %v922 = vor.u32 %v918, %v921
        %v923 = vrot.slane %v922, 4
        %v925 = vshll.u32 %v900, 16
        %v927 = vrot.slane %v925, 5
        %v928 = vsel %vm575, %v923, %v927
        %v930 = vshrl.u32 %v901, 16
        %v932 = vrot.slane %v930, 4
        %v933 = vshll.u32 %v901, 16
        %v935 = vrot.slane %v933, 5
        %v936 = vor.u32 %v932, %v935
        %v937 = vrot.slane %v936, 4
        %v939 = vshll.u32 %v902, 16
        %v941 = vrot.slane %v939, 5
        %v942 = vsel %vm575, %v937, %v941
        %v944 = vshrl.u32 %v903, 16
        %v946 = vrot.slane %v944, 4
        %v947 = vshll.u32 %v903, 16
        %v949 = vrot.slane %v947, 5
        %v950 = vor.u32 %v946, %v949
        %v951 = vrot.slane %v950, 4
        %v953 = vshll.u32 %v904, 16
        %v955 = vrot.slane %v953, 5
        %v956 = vsel %vm575, %v951, %v955
        %v958 = vshrl.u32 %v905, 16
        %v960 = vrot.slane %v958, 4
        %v961 = vshll.u32 %v905, 16
        %v963 = vrot.slane %v961, 5
        %v964 = vor.u32 %v960, %v963
        %v965 = vrot.slane %v964, 4
        %v967 = vshll.u32 %v906, 16
        %v969 = vrot.slane %v967, 5
        %v970 = vsel %vm575, %v965, %v969
        %v972 = vshrl.u32 %v907, 16
        %v974 = vrot.slane %v972, 4
        %v975 = vshll.u32 %v907, 16
        %v977 = vrot.slane %v975, 5
        %v978 = vor.u32 %v974, %v977
        %v979 = vrot.slane %v978, 4
        %v981 = vshll.u32 %v908, 16
        %v983 = vrot.slane %v981, 5
        %v984 = vsel %vm575, %v979, %v983
        %v986 = vshrl.u32 %v909, 16
        %v988 = vrot.slane %v986, 4
        %v989 = vshll.u32 %v909, 16
        %v991 = vrot.slane %v989, 5
        %v992 = vor.u32 %v988, %v991
        %v993 = vrot.slane %v992, 4
        %v995 = vshll.u32 %v910, 16
        %v997 = vrot.slane %v995, 5
        %v998 = vsel %vm575, %v993, %v997
        %v1000 = vshrl.u32 %v911, 16
        %v1002 = vrot.slane %v1000, 4
        %v1003 = vshll.u32 %v911, 16
        %v1005 = vrot.slane %v1003, 5
        %v1006 = vor.u32 %v1002, %v1005
        %v1007 = vrot.slane %v1006, 4
        %v1009 = vshll.u32 %v912, 16
        %v1011 = vrot.slane %v1009, 5
        %v1012 = vsel %vm575, %v1007, %v1011
        %v1014 = vshrl.u32 %v913, 16
        %v1016 = vrot.slane %v1014, 4
        %v1017 = vshll.u32 %v913, 16
        %v1019 = vrot.slane %v1017, 5
        %v1020 = vor.u32 %v1016, %v1019
        %v1021 = vrot.slane %v1020, 4
        %v1023 = vshll.u32 %v914, 16
        %v1025 = vrot.slane %v1023, 5
        %v1026 = vsel %vm575, %v1021, %v1025
        %s1027 = scalar_lea.vmem %s1, 10
        %v1028 = vld [vmem:[%s1027] sm:$0x3]
        %v1029 = vunpack.c.l.b16 %v928
        %v1030 = vunpack.c.l.b16 %v942
        %v1031 = vunpack.c.l.b16 %v956
        %v1032 = vunpack.c.l.b16 %v970
        %v1033 = vunpack.c.l.b16 %v984
        %v1034 = vunpack.c.l.b16 %v998
        %v1035 = vunpack.c.l.b16 %v1012
        %v1036 = vunpack.c.l.b16 %v1026
        %v1037 = vpack.c.b16 %v1030, %v1029
        %v1038 = vpack.c.b16 %v1032, %v1031
        %v1039 = vpack.c.b16 %v1034, %v1033
        %v1040 = vpack.c.b16 %v1036, %v1035
        %v1042 = vsel %vm467, %v1037, 0
        %v1045 = vsel %vm467, %v1038, 0
        %v1048 = vsel %vm467, %v1039, 0
        %v1051 = vsel %vm467, %v1040, 0
        %v1054 = vsel %vm480, %v1028, 0
        %1056 = vmatpush.bf16.msra.mxu0 0
        %1057 = vmatpush.bf16.msra.mxu0 0
        %1058 = vmatpush.bf16.msra.mxu0 0
        %1059 = vmatpush.bf16.msra.mxu0 0
        %1060 = vmatpush.bf16.msra.mxu0 0
        %1061 = vmatpush.bf16.msra.mxu0 0
        %1062 = vmatpush.bf16.msra.mxu0 0
        %1063 = vmatpush.bf16.msra.mxu0 %v1054
        %1064 = vmatmul.bf16.gmra.mxu0 %v1042
        %v1065 = vpop.f32.mrf.mxu0
        %v1066 = vadd.f32 0.0, %v1065
        %v1067 = vpop.f32.mrf.mxu0
        %v1068 = vadd.f32 0.0, %v1067
        %1069 = vmatmul.bf16.gmra.mxu0 %v1045
        %v1070 = vpop.f32.mrf.mxu0
        %v1071 = vadd.f32 0.0, %v1070
        %v1072 = vpop.f32.mrf.mxu0
        %v1073 = vadd.f32 0.0, %v1072
        %1074 = vmatmul.bf16.gmra.mxu0 %v1048
        %v1075 = vpop.f32.mrf.mxu0
        %v1076 = vadd.f32 0.0, %v1075
        %v1077 = vpop.f32.mrf.mxu0
        %v1078 = vadd.f32 0.0, %v1077
        %1079 = vmatmul.bf16.gmra.mxu0 %v1051
        %v1080 = vpop.f32.mrf.mxu0
        %v1081 = vadd.f32 0.0, %v1080
        %v1082 = vpop.f32.mrf.mxu0
        %v1083 = vadd.f32 0.0, %v1082
        %1084 = vdwg.mxu0
        %v1085 = vadd.f32 %v891, %v1066
        %v1086 = vadd.f32 %v892, %v1068
        %v1087 = vadd.f32 %v893, %v1071
        %v1088 = vadd.f32 %v894, %v1073
        %v1089 = vadd.f32 %v895, %v1076
        %v1090 = vadd.f32 %v896, %v1078
        %v1091 = vadd.f32 %v897, %v1081
        %v1092 = vadd.f32 %v898, %v1083
        %s1093 = scalar_lea.vmem %s396, 128 [#allocation2]
        %v1094 = vld [vmem:[%s1093] sm:$0xf]
        %v1095 = vld [vmem:[%s1093 + $0x8] sm:$0xf]
        %v1096 = vld [vmem:[%s1093 + $0x10] sm:$0xf]
        %v1097 = vld [vmem:[%s1093 + $0x18] sm:$0xf]
        %v1098 = vld [vmem:[%s1093 + $0x20] sm:$0xf]
        %v1099 = vld [vmem:[%s1093 + $0x28] sm:$0xf]
        %v1100 = vld [vmem:[%s1093 + $0x30] sm:$0xf]
        %v1101 = vld [vmem:[%s1093 + $0x38] sm:$0xf]
        %s1102 = scalar_lea.vmem %s1, 12
        %v1103 = vld [vmem:[%s1102] sm:$0x3]
        %v1112 = vunpack.c.l.b16 %v1094
        %v1113 = vunpack.c.l.b16 %v1095
        %v1114 = vunpack.c.l.b16 %v1096
        %v1115 = vunpack.c.l.b16 %v1097
        %v1116 = vunpack.c.l.b16 %v1098
        %v1117 = vunpack.c.l.b16 %v1099
        %v1118 = vunpack.c.l.b16 %v1100
        %v1119 = vunpack.c.l.b16 %v1101
        %v1120 = vpack.c.b16 %v1113, %v1112
        %v1121 = vpack.c.b16 %v1115, %v1114
        %v1122 = vpack.c.b16 %v1117, %v1116
        %v1123 = vpack.c.b16 %v1119, %v1118
        %v1125 = vsel %vm467, %v1120, 0
        %v1128 = vsel %vm467, %v1121, 0
        %v1131 = vsel %vm467, %v1122, 0
        %v1134 = vsel %vm467, %v1123, 0
        %v1137 = vsel %vm480, %v1103, 0
        %1139 = vmatpush.bf16.msra.mxu0 0
        %1140 = vmatpush.bf16.msra.mxu0 0
        %1141 = vmatpush.bf16.msra.mxu0 0
        %1142 = vmatpush.bf16.msra.mxu0 0
        %1143 = vmatpush.bf16.msra.mxu0 0
        %1144 = vmatpush.bf16.msra.mxu0 0
        %1145 = vmatpush.bf16.msra.mxu0 0
        %1146 = vmatpush.bf16.msra.mxu0 %v1137
        %1147 = vmatmul.bf16.gmra.mxu0 %v1125
        %v1148 = vpop.f32.mrf.mxu0
        %v1149 = vadd.f32 0.0, %v1148
        %v1150 = vpop.f32.mrf.mxu0
        %v1151 = vadd.f32 0.0, %v1150
        %1152 = vmatmul.bf16.gmra.mxu0 %v1128
        %v1153 = vpop.f32.mrf.mxu0
        %v1154 = vadd.f32 0.0, %v1153
        %v1155 = vpop.f32.mrf.mxu0
        %v1156 = vadd.f32 0.0, %v1155
        %1157 = vmatmul.bf16.gmra.mxu0 %v1131
        %v1158 = vpop.f32.mrf.mxu0
        %v1159 = vadd.f32 0.0, %v1158
        %v1160 = vpop.f32.mrf.mxu0
        %v1161 = vadd.f32 0.0, %v1160
        %1162 = vmatmul.bf16.gmra.mxu0 %v1134
        %v1163 = vpop.f32.mrf.mxu0
        %v1164 = vadd.f32 0.0, %v1163
        %v1165 = vpop.f32.mrf.mxu0
        %v1166 = vadd.f32 0.0, %v1165
        %1167 = vdwg.mxu0
        %v1168 = vadd.f32 %v1085, %v1149
        %v1169 = vadd.f32 %v1086, %v1151
        %v1170 = vadd.f32 %v1087, %v1154
        %v1171 = vadd.f32 %v1088, %v1156
        %v1172 = vadd.f32 %v1089, %v1159
        %v1173 = vadd.f32 %v1090, %v1161
        %v1174 = vadd.f32 %v1091, %v1164
        %v1175 = vadd.f32 %v1092, %v1166
        %s1176 = scalar_lea.vmem %s1, 14
        %v1177 = vld [vmem:[%s1176] sm:$0x3]
        %1178 = vrot.lane.b32.xlu0 %v1120, 124
        %v1179 = vpop.permute.xlu0 %1178
        %1180 = vrot.lane.b32.xlu0 %v1121, 124
        %v1181 = vpop.permute.xlu0 %1180
        %1182 = vrot.lane.b32.xlu0 %v1122, 124
        %v1183 = vpop.permute.xlu0 %1182
        %1184 = vrot.lane.b32.xlu0 %v1123, 124
        %v1185 = vpop.permute.xlu0 %1184
        %v1187 = vsel %vm467, %v1179, 0
        %v1190 = vsel %vm467, %v1181, 0
        %v1193 = vsel %vm467, %v1183, 0
        %v1196 = vsel %vm467, %v1185, 0
        %v1199 = vsel %vm480, %v1177, 0
        %1201 = vmatpush.bf16.msra.mxu0 0
        %1202 = vmatpush.bf16.msra.mxu0 0
        %1203 = vmatpush.bf16.msra.mxu0 0
        %1204 = vmatpush.bf16.msra.mxu0 0
        %1205 = vmatpush.bf16.msra.mxu0 0
        %1206 = vmatpush.bf16.msra.mxu0 0
        %1207 = vmatpush.bf16.msra.mxu0 0
        %1208 = vmatpush.bf16.msra.mxu0 %v1199
        %1209 = vmatmul.bf16.gmra.mxu0 %v1187
        %v1210 = vpop.f32.mrf.mxu0
        %v1211 = vadd.f32 0.0, %v1210
        %v1212 = vpop.f32.mrf.mxu0
        %v1213 = vadd.f32 0.0, %v1212
        %1214 = vmatmul.bf16.gmra.mxu0 %v1190
        %v1215 = vpop.f32.mrf.mxu0
        %v1216 = vadd.f32 0.0, %v1215
        %v1217 = vpop.f32.mrf.mxu0
        %v1218 = vadd.f32 0.0, %v1217
        %1219 = vmatmul.bf16.gmra.mxu0 %v1193
        %v1220 = vpop.f32.mrf.mxu0
        %v1221 = vadd.f32 0.0, %v1220
        %v1222 = vpop.f32.mrf.mxu0
        %v1223 = vadd.f32 0.0, %v1222
        %1224 = vmatmul.bf16.gmra.mxu0 %v1196
        %v1225 = vpop.f32.mrf.mxu0
        %v1226 = vadd.f32 0.0, %v1225
        %v1227 = vpop.f32.mrf.mxu0
        %v1228 = vadd.f32 0.0, %v1227
        %1229 = vdwg.mxu0
        %v1230 = vadd.f32 %v1168, %v1211
        %v1231 = vadd.f32 %v1169, %v1213
        %v1232 = vadd.f32 %v1170, %v1216
        %v1233 = vadd.f32 %v1171, %v1218
        %v1234 = vadd.f32 %v1172, %v1221
        %v1235 = vadd.f32 %v1173, %v1223
        %v1236 = vadd.f32 %v1174, %v1226
        %v1237 = vadd.f32 %v1175, %v1228
        %v1238 = vld [vmem:[%s1093] sm:$0xf]
        %v1239 = vld [vmem:[%s1093 + $0x4] sm:$0x1]
        %v1240 = vld [vmem:[%s1093 + $0x8] sm:$0xf]
        %v1241 = vld [vmem:[%s1093 + $0xc] sm:$0x1]
        %v1242 = vld [vmem:[%s1093 + $0x10] sm:$0xf]
        %v1243 = vld [vmem:[%s1093 + $0x14] sm:$0x1]
        %v1244 = vld [vmem:[%s1093 + $0x18] sm:$0xf]
        %v1245 = vld [vmem:[%s1093 + $0x1c] sm:$0x1]
        %v1246 = vld [vmem:[%s1093 + $0x20] sm:$0xf]
        %v1247 = vld [vmem:[%s1093 + $0x24] sm:$0x1]
        %v1248 = vld [vmem:[%s1093 + $0x28] sm:$0xf]
        %v1249 = vld [vmem:[%s1093 + $0x2c] sm:$0x1]
        %v1250 = vld [vmem:[%s1093 + $0x30] sm:$0xf]
        %v1251 = vld [vmem:[%s1093 + $0x34] sm:$0x1]
        %v1252 = vld [vmem:[%s1093 + $0x38] sm:$0xf]
        %v1253 = vld [vmem:[%s1093 + $0x3c] sm:$0x1]
        %v1255 = vshrl.u32 %v1238, 16
        %v1257 = vrot.slane %v1255, 4
        %v1258 = vshll.u32 %v1238, 16
        %v1260 = vrot.slane %v1258, 5
        %v1261 = vor.u32 %v1257, %v1260
        %v1262 = vrot.slane %v1261, 4
        %v1264 = vshll.u32 %v1239, 16
        %v1266 = vrot.slane %v1264, 5
        %v1267 = vsel %vm575, %v1262, %v1266
        %v1269 = vshrl.u32 %v1240, 16
        %v1271 = vrot.slane %v1269, 4
        %v1272 = vshll.u32 %v1240, 16
        %v1274 = vrot.slane %v1272, 5
        %v1275 = vor.u32 %v1271, %v1274
        %v1276 = vrot.slane %v1275, 4
        %v1278 = vshll.u32 %v1241, 16
        %v1280 = vrot.slane %v1278, 5
        %v1281 = vsel %vm575, %v1276, %v1280
        %v1283 = vshrl.u32 %v1242, 16
        %v1285 = vrot.slane %v1283, 4
        %v1286 = vshll.u32 %v1242, 16
        %v1288 = vrot.slane %v1286, 5
        %v1289 = vor.u32 %v1285, %v1288
        %v1290 = vrot.slane %v1289, 4
        %v1292 = vshll.u32 %v1243, 16
        %v1294 = vrot.slane %v1292, 5
        %v1295 = vsel %vm575, %v1290, %v1294
        %v1297 = vshrl.u32 %v1244, 16
        %v1299 = vrot.slane %v1297, 4
        %v1300 = vshll.u32 %v1244, 16
        %v1302 = vrot.slane %v1300, 5
        %v1303 = vor.u32 %v1299, %v1302
        %v1304 = vrot.slane %v1303, 4
        %v1306 = vshll.u32 %v1245, 16
        %v1308 = vrot.slane %v1306, 5
        %v1309 = vsel %vm575, %v1304, %v1308
        %v1311 = vshrl.u32 %v1246, 16
        %v1313 = vrot.slane %v1311, 4
        %v1314 = vshll.u32 %v1246, 16
        %v1316 = vrot.slane %v1314, 5
        %v1317 = vor.u32 %v1313, %v1316
        %v1318 = vrot.slane %v1317, 4
        %v1320 = vshll.u32 %v1247, 16
        %v1322 = vrot.slane %v1320, 5
        %v1323 = vsel %vm575, %v1318, %v1322
        %v1325 = vshrl.u32 %v1248, 16
        %v1327 = vrot.slane %v1325, 4
        %v1328 = vshll.u32 %v1248, 16
        %v1330 = vrot.slane %v1328, 5
        %v1331 = vor.u32 %v1327, %v1330
        %v1332 = vrot.slane %v1331, 4
        %v1334 = vshll.u32 %v1249, 16
        %v1336 = vrot.slane %v1334, 5
        %v1337 = vsel %vm575, %v1332, %v1336
        %v1339 = vshrl.u32 %v1250, 16
        %v1341 = vrot.slane %v1339, 4
        %v1342 = vshll.u32 %v1250, 16
        %v1344 = vrot.slane %v1342, 5
        %v1345 = vor.u32 %v1341, %v1344
        %v1346 = vrot.slane %v1345, 4
        %v1348 = vshll.u32 %v1251, 16
        %v1350 = vrot.slane %v1348, 5
        %v1351 = vsel %vm575, %v1346, %v1350
        %v1353 = vshrl.u32 %v1252, 16
        %v1355 = vrot.slane %v1353, 4
        %v1356 = vshll.u32 %v1252, 16
        %v1358 = vrot.slane %v1356, 5
        %v1359 = vor.u32 %v1355, %v1358
        %v1360 = vrot.slane %v1359, 4
        %v1362 = vshll.u32 %v1253, 16
        %v1364 = vrot.slane %v1362, 5
        %v1365 = vsel %vm575, %v1360, %v1364
        %s1366 = scalar_lea.vmem %s1, 16
        %v1367 = vld [vmem:[%s1366] sm:$0x3]
        %v1368 = vunpack.c.l.b16 %v1267
        %v1369 = vunpack.c.l.b16 %v1281
        %v1370 = vunpack.c.l.b16 %v1295
        %v1371 = vunpack.c.l.b16 %v1309
        %v1372 = vunpack.c.l.b16 %v1323
        %v1373 = vunpack.c.l.b16 %v1337
        %v1374 = vunpack.c.l.b16 %v1351
        %v1375 = vunpack.c.l.b16 %v1365
        %v1376 = vpack.c.b16 %v1369, %v1368
        %v1377 = vpack.c.b16 %v1371, %v1370
        %v1378 = vpack.c.b16 %v1373, %v1372
        %v1379 = vpack.c.b16 %v1375, %v1374
        %v1381 = vsel %vm467, %v1376, 0
        %v1384 = vsel %vm467, %v1377, 0
        %v1387 = vsel %vm467, %v1378, 0
        %v1390 = vsel %vm467, %v1379, 0
        %v1393 = vsel %vm480, %v1367, 0
        %1395 = vmatpush.bf16.msra.mxu0 0
        %1396 = vmatpush.bf16.msra.mxu0 0
        %1397 = vmatpush.bf16.msra.mxu0 0
        %1398 = vmatpush.bf16.msra.mxu0 0
        %1399 = vmatpush.bf16.msra.mxu0 0
        %1400 = vmatpush.bf16.msra.mxu0 0
        %1401 = vmatpush.bf16.msra.mxu0 0
        %1402 = vmatpush.bf16.msra.mxu0 %v1393
        %1403 = vmatmul.bf16.gmra.mxu0 %v1381
        %v1404 = vpop.f32.mrf.mxu0
        %v1405 = vadd.f32 0.0, %v1404
        %v1406 = vpop.f32.mrf.mxu0
        %v1407 = vadd.f32 0.0, %v1406
        %1408 = vmatmul.bf16.gmra.mxu0 %v1384
        %v1409 = vpop.f32.mrf.mxu0
        %v1410 = vadd.f32 0.0, %v1409
        %v1411 = vpop.f32.mrf.mxu0
        %v1412 = vadd.f32 0.0, %v1411
        %1413 = vmatmul.bf16.gmra.mxu0 %v1387
        %v1414 = vpop.f32.mrf.mxu0
        %v1415 = vadd.f32 0.0, %v1414
        %v1416 = vpop.f32.mrf.mxu0
        %v1417 = vadd.f32 0.0, %v1416
        %1418 = vmatmul.bf16.gmra.mxu0 %v1390
        %v1419 = vpop.f32.mrf.mxu0
        %v1420 = vadd.f32 0.0, %v1419
        %v1421 = vpop.f32.mrf.mxu0
        %v1422 = vadd.f32 0.0, %v1421
        %1423 = vdwg.mxu0
        %v1424 = vadd.f32 %v1230, %v1405
        %v1425 = vadd.f32 %v1231, %v1407
        %v1426 = vadd.f32 %v1232, %v1410
        %v1427 = vadd.f32 %v1233, %v1412
        %v1428 = vadd.f32 %v1234, %v1415
        %v1429 = vadd.f32 %v1235, %v1417
        %v1430 = vadd.f32 %v1236, %v1420
        %v1431 = vadd.f32 %v1237, %v1422
        %v1432 = vld [vmem:[%s2] sm:$0x1]
        %v1434 = vperm.slane %v1432, 0
        %v1436 = vadd.f32 %v1424, %v1434
        %v1437 = vadd.f32 %v1425, %v1434
        %v1438 = vadd.f32 %v1426, %v1434
        %v1439 = vadd.f32 %v1427, %v1434
        %v1440 = vadd.f32 %v1428, %v1434
        %v1441 = vadd.f32 %v1429, %v1434
        %v1442 = vadd.f32 %v1430, %v1434
        %v1443 = vadd.f32 %v1431, %v1434
        %v1444 = vmul.f32 %v1436, 0.01
        %v1445 = vmul.f32 %v1437, 0.01
        %v1446 = vmul.f32 %v1438, 0.01
        %v1447 = vmul.f32 %v1439, 0.01
        %v1448 = vmul.f32 %v1440, 0.01
        %v1449 = vmul.f32 %v1441, 0.01
        %v1450 = vmul.f32 %v1442, 0.01
        %v1451 = vmul.f32 %v1443, 0.01
        %v1452 = vmax.f32 %v1436, %v1444
        %v1453 = vmax.f32 %v1437, %v1445
        %v1454 = vmax.f32 %v1438, %v1446
        %v1455 = vmax.f32 %v1439, %v1447
        %v1456 = vmax.f32 %v1440, %v1448
        %v1457 = vmax.f32 %v1441, %v1449
        %v1458 = vmax.f32 %v1442, %v1450
        %v1459 = vmax.f32 %v1443, %v1451
        %1460 = vst.msk [vmem:[%s424] sm:$0xff] %vm467, %v1452
        %1461 = vst.msk [vmem:[%s424 + $0x8] sm:$0xff] %vm467, %v1453
        %1462 = vst.msk [vmem:[%s424 + $0x10] sm:$0xff] %vm467, %v1454
        %1463 = vst.msk [vmem:[%s424 + $0x18] sm:$0xff] %vm467, %v1455
        %1464 = vst.msk [vmem:[%s424 + $0x20] sm:$0xff] %vm467, %v1456
        %1465 = vst.msk [vmem:[%s424 + $0x28] sm:$0xff] %vm467, %v1457
        %1466 = vst.msk [vmem:[%s424 + $0x30] sm:$0xff] %vm467, %v1458
        %1467 = vst.msk [vmem:[%s424 + $0x38] sm:$0xff] %vm467, %v1459
        %s1468 = sadd.s32 %s18, %s19
        %s1469 = smul.u32 8, %s1468
        %p1470 = scmp.lt.s32.totalorder %s1469, 15
        %s1471 = scalar_select %p1470, %s1469, 15
        %s1472 = smul.addr %s1471, 8
        %s1473 = scalar_lea.vmem %s3, %s1472
        // Predicated region
        $region74: #{tpu_custom_call.1} parent=68 // pred_check
          %p1474 = pneg %p116
        $region75: #{tpu_custom_call.1} parent=68 // pred_check_branch
          %1476 = sbr.rel (%p1474) target = $region77
        $region76: #{tpu_custom_call.1} parent=68 // pred_region
          %s1477 = sadd.s32 %s18, %s19
          %s1478 = smul.u32 8, %s1477
        $region77: #{tpu_custom_call.1} parent=68 // pred_fallthru
          _
      $region69: #{tpu_custom_call.1} parent=5 // pred_fallthru
        _
      %p1479 = scmp.le.s32.totalorder 2, %s9
      // Predicated region
      $region78: #{tpu_custom_call.1} parent=5 // pred_check
        %p1480 = pneg %p1479
      $region79: #{tpu_custom_call.1} parent=5 // pred_check_branch
        %1482 = sbr.rel (%p1480) target = $region81
      $region80: #{tpu_custom_call.1} parent=5 // pred_region
        %s1483 = ssub.s32 %s9, 2
        // Predicated region
        $region82: #{tpu_custom_call.1} parent=80 // pred_check
          %p1484 = pneg %p122
        $region83: #{tpu_custom_call.1} parent=80 // pred_check_branch
          %1486 = sbr.rel (%p1484) target = $region85
        $region84: #{tpu_custom_call.1} parent=80 // pred_region
          %s1487 = sadd.s32 %s20, %s21
          %s1488 = smul.u32 8, %s1487
          %p1489 = scmp.lt.s32.totalorder %s1488, 15
          %s1490 = scalar_select %p1489, %s1488, 15
          %s1491 = smul.addr %s1490, 8
          %s1492 = scalar_lea.vmem %s3, %s1491
        $region85: #{tpu_custom_call.1} parent=80 // pred_fallthru
          _
      $region81: #{tpu_custom_call.1} parent=5 // pred_fallthru
        _
    $region6: #{tpu_custom_call.1} parent=1 // loop_footer
      %s13 = sadd.s32 1, %s9
    $region7: #{tpu_custom_call.1} parent=1 // loop_footer_branch
      %8 = sbr.rel target = $region3
    $region8: #{tpu_custom_call.1} parent=1 // loop_exit
      _

</llo_original>
